<compile_context>
chip_gen: v6e
topology: v6e:2x2x1
jax: 0.10.0
libtpu: 0.0.40
codegen_flags: <defaults>
</compile_context>

<pallas_src>
import functools

import jax
import jax.numpy as jnp
from jax.experimental import pallas as pl
from jax.experimental.pallas import tpu as pltpu

EPS = 1e-5


def fused_conv_bn_relu_kernel(x_ref, w_ref, b_ref, g_ref, be_ref, o_ref, *,
                              N, Wp, W, L, Lp, inv_count):
    """Fused 3x3 conv + bias + training-mode BatchNorm + ReLU, whole batch.

    x_ref:  (Cin, Wtot)      N zero-padded images laid out along lanes at
                             stride Lp (row stride Wp inside each image).
    w_ref:  (9, Cout, Cin)   weights, tap-major (dy, dx).
    b_ref:  (Cout, 1)        conv bias.
    g_ref:  (Cout, 1)        BN gamma.
    be_ref: (Cout, 1)        BN beta.
    o_ref:  (N, Cout, Lp)    normalized+ReLU output, padded-flat per image.
    """
    Cout = o_ref.shape[1]
    NLp = N * Lp

    # 3x3 conv as 9 accumulated MXU matmuls over the whole batch at once.
    # Each tap is a single (misaligned but cheap) lane slice; no concatenate.
    acc = jnp.zeros((Cout, NLp), dtype=jnp.float32)
    for dy in range(3):
        for dx in range(3):
            t = dy * 3 + dx
            off = dy * Wp + dx
            x_tap = x_ref[:, off:off + NLp]                     # (Cin, N*Lp)
            acc = acc + jax.lax.dot_general(
                w_ref[t], x_tap,
                dimension_numbers=(((1,), (0,)), ((), ())),
                preferred_element_type=jnp.float32)
    acc = acc + b_ref[...]                                      # (Cout, N*Lp)

    # Validity mask generated in-kernel: column p within an image's Lp-wide
    # region is a real conv output iff p < H*Wp and (p % Wp) < W.
    col = jax.lax.broadcasted_iota(jnp.int32, (1, NLp), 1)
    p = col % Lp
    m = jnp.logical_and(p < L, (p % Wp) < W).astype(jnp.float32)

    # Training-mode BatchNorm statistics over the whole batch (biased var).
    am = acc * m
    ch_sum = jnp.sum(am, axis=1, keepdims=True)                 # (Cout, 1)
    ch_sq = jnp.sum(am * acc, axis=1, keepdims=True)            # (Cout, 1)
    mean = ch_sum * inv_count
    var = ch_sq * inv_count - mean * mean
    inv_std = jax.lax.rsqrt(var + EPS)
    scale = g_ref[...] * inv_std
    shift = be_ref[...] - mean * scale

    y = jnp.maximum(acc * scale + shift, 0.0)

    # Lane-aligned (n*Lp is a multiple of 128) unmasked per-image stores.
    for n in range(N):
        o_ref[n, :, :] = y[:, n * Lp:(n + 1) * Lp].astype(o_ref.dtype)


@jax.jit
def single_conv_forward(x_nchw, w_oihw, bias, gamma, beta):
    """Forward pass matching PyTorch single_conv(ch_in, ch_out) in train mode."""
    N, Cin, H, W = x_nchw.shape
    Cout = w_oihw.shape[0]
    Wp = W + 2
    L = H * Wp                       # per-image valid output flat length (288)
    Limg = (H + 2) * Wp              # per-image zero-padded input flat length (324)
    # Per-image region width: >= Limg (so every tap read for a valid output
    # stays inside the image's own region) and a multiple of 128 lanes so all
    # output stores are unmasked lane-dense vst.
    Lp = ((Limg + 127) // 128) * 128
    NLp = N * Lp
    Wtot = NLp + 128                 # slack so every tap slice (off <= 2*Wp+2) is in bounds

    # Glue: zero-pad spatially (pad=1), flatten, and lay the N images side by
    # side along lanes at stride Lp (zero-separated).  NCHW end-to-end.
    # TODO(synk): fold this padding/layout into the kernel with masked halo
    # loads + an H-row grid axis once H*W no longer fits comfortably in VMEM.
    x_pad = jnp.pad(x_nchw, ((0, 0), (0, 0), (1, 1), (1, 1)))
    x_img = x_pad.reshape(N, Cin, Limg)
    x_img = jnp.pad(x_img, ((0, 0), (0, 0), (0, Lp - Limg)))
    x_flat = jnp.pad(jnp.transpose(x_img, (1, 0, 2)).reshape(Cin, NLp),
                     ((0, 0), (0, Wtot - NLp)))

    # OIHW -> (9, Cout, Cin), tap-major (dy, dx).
    w_taps = jnp.transpose(w_oihw, (2, 3, 0, 1)).reshape(9, Cout, Cin)
    b2 = bias.reshape(Cout, 1).astype(jnp.float32)
    g2 = gamma.reshape(Cout, 1).astype(jnp.float32)
    be2 = beta.reshape(Cout, 1).astype(jnp.float32)
    inv_count = 1.0 / float(N * H * W)

    kernel = functools.partial(
        fused_conv_bn_relu_kernel,
        N=N, Wp=Wp, W=W, L=L, Lp=Lp, inv_count=inv_count)

    y_flat = pl.pallas_call(
        kernel,
        grid=(1,),
        in_specs=[
            pl.BlockSpec((Cin, Wtot), lambda i: (0, 0)),
            pl.BlockSpec((9, Cout, Cin), lambda i: (0, 0, 0)),
            pl.BlockSpec((Cout, 1), lambda i: (0, 0)),
            pl.BlockSpec((Cout, 1), lambda i: (0, 0)),
            pl.BlockSpec((Cout, 1), lambda i: (0, 0)),
        ],
        out_specs=pl.BlockSpec((N, Cout, Lp), lambda i: (0, 0, 0)),
        out_shape=jax.ShapeDtypeStruct((N, Cout, Lp), jnp.float32),
        compiler_params=pltpu.CompilerParams(
            dimension_semantics=("arbitrary",),
            vmem_limit_bytes=16 * 1024 * 1024),
        cost_estimate=pl.CostEstimate(
            flops=2 * Cout * 9 * Cin * NLp + 6 * Cout * NLp,
            transcendentals=Cout,
            bytes_accessed=4 * (Cin * Wtot + 9 * Cout * Cin + 3 * Cout
                                + N * Cout * Lp)),
    )(x_flat, w_taps, b2, g2, be2)

    # Drop pad/garbage columns: (N, Cout, Lp) -> (N, Cout, H, W).
    return y_flat[:, :, :L].reshape(N, Cout, H, Wp)[:, :, :, :W]


def reference_forward(x_nchw, w_oihw, bias, gamma, beta):
    """Pure-JAX reference (same semantics) for a correctness check."""
    y = jax.lax.conv_general_dilated(
        x_nchw, w_oihw, window_strides=(1, 1), padding=((1, 1), (1, 1)),
        dimension_numbers=("NCHW", "OIHW", "NCHW"))
    y = y + bias[None, :, None, None]
    mean = y.mean(axis=(0, 2, 3), keepdims=True)
    var = ((y - mean) ** 2).mean(axis=(0, 2, 3), keepdims=True)
    y = (y - mean) * jax.lax.rsqrt(var + EPS)
    y = y * gamma[None, :, None, None] + beta[None, :, None, None]
    return jnp.maximum(y, 0.0)


if __name__ == "__main__":
    # Small shapes consistent with the module's forward.
    N, CH_IN, CH_OUT, H, W = 2, 4, 8, 16, 16

    key = jax.random.PRNGKey(0)
    kx, kw, kb = jax.random.split(key, 3)

    x = jax.random.normal(kx, (N, CH_IN, H, W), dtype=jnp.float32)
    # Conv2d(ch_in, ch_out, 3) weight: (Cout, Cin, 3, 3), bias: (Cout,)
    w = jax.random.normal(kw, (CH_OUT, CH_IN, 3, 3), dtype=jnp.float32) * 0.1
    b = jax.random.normal(kb, (CH_OUT,), dtype=jnp.float32) * 0.1
    # BatchNorm2d default init: weight (gamma) = 1, bias (beta) = 0
    gamma = jnp.ones((CH_OUT,), dtype=jnp.float32)
    beta = jnp.zeros((CH_OUT,), dtype=jnp.float32)

    out = single_conv_forward(x, w, b, gamma, beta)
    jax.block_until_ready(out)

    ref = reference_forward(x, w, b, gamma, beta)
    assert out.shape == (N, CH_OUT, H, W)
    assert jnp.allclose(out, ref, atol=1e-4, rtol=1e-4), "mismatch vs reference"

    print("KERNEL_OK")
</pallas_src>

<mosaic_0001>
module attributes {stable_mosaic.version = 11 : i64} {
  func.func @fused_conv_bn_relu_kernel(%arg0: i32, %arg1: memref<4x896xf32, #tpu.memory_space<vmem>>, %arg2: memref<9x8x4xf32, #tpu.memory_space<vmem>>, %arg3: memref<8x1xf32, #tpu.memory_space<vmem>>, %arg4: memref<8x1xf32, #tpu.memory_space<vmem>>, %arg5: memref<8x1xf32, #tpu.memory_space<vmem>>, %arg6: memref<2x8x384xf32, #tpu.memory_space<vmem>>) attributes {dimension_semantics = [#tpu.dimension_semantics<arbitrary>], iteration_bounds = array<i64: 1>, scalar_prefetch = 0 : i64, scratch_operands = 0 : i64, tpu.core_type = #tpu.core_type<tc>, window_params = [{pipeline_mode = #tpu.pipeline_mode<synchronous>, transform_indices = @transform_0, window_bounds = array<i64: 4, 896>}, {pipeline_mode = #tpu.pipeline_mode<synchronous>, transform_indices = @transform_1, window_bounds = array<i64: 9, 8, 4>}, {pipeline_mode = #tpu.pipeline_mode<synchronous>, transform_indices = @transform_2, window_bounds = array<i64: 8, 1>}, {pipeline_mode = #tpu.pipeline_mode<synchronous>, transform_indices = @transform_3, window_bounds = array<i64: 8, 1>}, {pipeline_mode = #tpu.pipeline_mode<synchronous>, transform_indices = @transform_4, window_bounds = array<i64: 8, 1>}, {pipeline_mode = #tpu.pipeline_mode<synchronous>, transform_indices = @transform_5, window_bounds = array<i64: 2, 8, 384>}]} {
    %cst = arith.constant 0.000000e+00 : f32
    %0 = vector.broadcast %cst : f32 to vector<8x768xf32>
    %c0 = arith.constant 0 : index
    %c0_0 = arith.constant 0 : index
    %1 = vector.load %arg1[%c0, %c0_0] : memref<4x896xf32, #tpu.memory_space<vmem>>, vector<4x768xf32>
    %c0_1 = arith.constant 0 : index
    %c0_2 = arith.constant 0 : index
    %c0_3 = arith.constant 0 : index
    %2 = vector.load %arg2[%c0_1, %c0_2, %c0_3] : memref<9x8x4xf32, #tpu.memory_space<vmem>>, vector<1x8x4xf32>
    %3 = vector.shape_cast %2 : vector<1x8x4xf32> to vector<8x4xf32>
    %cst_4 = arith.constant dense<0.000000e+00> : vector<8x768xf32>
    %4 = tpu.matmul %3, %1, %cst_4 {dimension_numbers = #tpu.dot_dimension_numbers<[1], [0], [0], [1], [0, 0, 1, 1], [], []>} : vector<8x4xf32>, vector<4x768xf32>, vector<8x768xf32> -> vector<8x768xf32>
    %5 = arith.addf %0, %4 : vector<8x768xf32>
    %c0_5 = arith.constant 0 : index
    %c1 = arith.constant 1 : index
    %6 = vector.load %arg1[%c0_5, %c1] : memref<4x896xf32, #tpu.memory_space<vmem>>, vector<4x768xf32>
    %c1_6 = arith.constant 1 : index
    %c0_7 = arith.constant 0 : index
    %c0_8 = arith.constant 0 : index
    %7 = vector.load %arg2[%c1_6, %c0_7, %c0_8] : memref<9x8x4xf32, #tpu.memory_space<vmem>>, vector<1x8x4xf32>
    %8 = vector.shape_cast %7 : vector<1x8x4xf32> to vector<8x4xf32>
    %cst_9 = arith.constant dense<0.000000e+00> : vector<8x768xf32>
    %9 = tpu.matmul %8, %6, %cst_9 {dimension_numbers = #tpu.dot_dimension_numbers<[1], [0], [0], [1], [0, 0, 1, 1], [], []>} : vector<8x4xf32>, vector<4x768xf32>, vector<8x768xf32> -> vector<8x768xf32>
    %10 = arith.addf %5, %9 : vector<8x768xf32>
    %c0_10 = arith.constant 0 : index
    %c2 = arith.constant 2 : index
    %11 = vector.load %arg1[%c0_10, %c2] : memref<4x896xf32, #tpu.memory_space<vmem>>, vector<4x768xf32>
    %c2_11 = arith.constant 2 : index
    %c0_12 = arith.constant 0 : index
    %c0_13 = arith.constant 0 : index
    %12 = vector.load %arg2[%c2_11, %c0_12, %c0_13] : memref<9x8x4xf32, #tpu.memory_space<vmem>>, vector<1x8x4xf32>
    %13 = vector.shape_cast %12 : vector<1x8x4xf32> to vector<8x4xf32>
    %cst_14 = arith.constant dense<0.000000e+00> : vector<8x768xf32>
    %14 = tpu.matmul %13, %11, %cst_14 {dimension_numbers = #tpu.dot_dimension_numbers<[1], [0], [0], [1], [0, 0, 1, 1], [], []>} : vector<8x4xf32>, vector<4x768xf32>, vector<8x768xf32> -> vector<8x768xf32>
    %15 = arith.addf %10, %14 : vector<8x768xf32>
    %c0_15 = arith.constant 0 : index
    %c18 = arith.constant 18 : index
    %16 = vector.load %arg1[%c0_15, %c18] : memref<4x896xf32, #tpu.memory_space<vmem>>, vector<4x768xf32>
    %c3 = arith.constant 3 : index
    %c0_16 = arith.constant 0 : index
    %c0_17 = arith.constant 0 : index
    %17 = vector.load %arg2[%c3, %c0_16, %c0_17] : memref<9x8x4xf32, #tpu.memory_space<vmem>>, vector<1x8x4xf32>
    %18 = vector.shape_cast %17 : vector<1x8x4xf32> to vector<8x4xf32>
    %cst_18 = arith.constant dense<0.000000e+00> : vector<8x768xf32>
    %19 = tpu.matmul %18, %16, %cst_18 {dimension_numbers = #tpu.dot_dimension_numbers<[1], [0], [0], [1], [0, 0, 1, 1], [], []>} : vector<8x4xf32>, vector<4x768xf32>, vector<8x768xf32> -> vector<8x768xf32>
    %20 = arith.addf %15, %19 : vector<8x768xf32>
    %c0_19 = arith.constant 0 : index
    %c19 = arith.constant 19 : index
    %21 = vector.load %arg1[%c0_19, %c19] : memref<4x896xf32, #tpu.memory_space<vmem>>, vector<4x768xf32>
    %c4 = arith.constant 4 : index
    %c0_20 = arith.constant 0 : index
    %c0_21 = arith.constant 0 : index
    %22 = vector.load %arg2[%c4, %c0_20, %c0_21] : memref<9x8x4xf32, #tpu.memory_space<vmem>>, vector<1x8x4xf32>
    %23 = vector.shape_cast %22 : vector<1x8x4xf32> to vector<8x4xf32>
    %cst_22 = arith.constant dense<0.000000e+00> : vector<8x768xf32>
    %24 = tpu.matmul %23, %21, %cst_22 {dimension_numbers = #tpu.dot_dimension_numbers<[1], [0], [0], [1], [0, 0, 1, 1], [], []>} : vector<8x4xf32>, vector<4x768xf32>, vector<8x768xf32> -> vector<8x768xf32>
    %25 = arith.addf %20, %24 : vector<8x768xf32>
    %c0_23 = arith.constant 0 : index
    %c20 = arith.constant 20 : index
    %26 = vector.load %arg1[%c0_23, %c20] : memref<4x896xf32, #tpu.memory_space<vmem>>, vector<4x768xf32>
    %c5 = arith.constant 5 : index
    %c0_24 = arith.constant 0 : index
    %c0_25 = arith.constant 0 : index
    %27 = vector.load %arg2[%c5, %c0_24, %c0_25] : memref<9x8x4xf32, #tpu.memory_space<vmem>>, vector<1x8x4xf32>
    %28 = vector.shape_cast %27 : vector<1x8x4xf32> to vector<8x4xf32>
    %cst_26 = arith.constant dense<0.000000e+00> : vector<8x768xf32>
    %29 = tpu.matmul %28, %26, %cst_26 {dimension_numbers = #tpu.dot_dimension_numbers<[1], [0], [0], [1], [0, 0, 1, 1], [], []>} : vector<8x4xf32>, vector<4x768xf32>, vector<8x768xf32> -> vector<8x768xf32>
    %30 = arith.addf %25, %29 : vector<8x768xf32>
    %c0_27 = arith.constant 0 : index
    %c36 = arith.constant 36 : index
    %31 = vector.load %arg1[%c0_27, %c36] : memref<4x896xf32, #tpu.memory_space<vmem>>, vector<4x768xf32>
    %c6 = arith.constant 6 : index
    %c0_28 = arith.constant 0 : index
    %c0_29 = arith.constant 0 : index
    %32 = vector.load %arg2[%c6, %c0_28, %c0_29] : memref<9x8x4xf32, #tpu.memory_space<vmem>>, vector<1x8x4xf32>
    %33 = vector.shape_cast %32 : vector<1x8x4xf32> to vector<8x4xf32>
    %cst_30 = arith.constant dense<0.000000e+00> : vector<8x768xf32>
    %34 = tpu.matmul %33, %31, %cst_30 {dimension_numbers = #tpu.dot_dimension_numbers<[1], [0], [0], [1], [0, 0, 1, 1], [], []>} : vector<8x4xf32>, vector<4x768xf32>, vector<8x768xf32> -> vector<8x768xf32>
    %35 = arith.addf %30, %34 : vector<8x768xf32>
    %c0_31 = arith.constant 0 : index
    %c37 = arith.constant 37 : index
    %36 = vector.load %arg1[%c0_31, %c37] : memref<4x896xf32, #tpu.memory_space<vmem>>, vector<4x768xf32>
    %c7 = arith.constant 7 : index
    %c0_32 = arith.constant 0 : index
    %c0_33 = arith.constant 0 : index
    %37 = vector.load %arg2[%c7, %c0_32, %c0_33] : memref<9x8x4xf32, #tpu.memory_space<vmem>>, vector<1x8x4xf32>
    %38 = vector.shape_cast %37 : vector<1x8x4xf32> to vector<8x4xf32>
    %cst_34 = arith.constant dense<0.000000e+00> : vector<8x768xf32>
    %39 = tpu.matmul %38, %36, %cst_34 {dimension_numbers = #tpu.dot_dimension_numbers<[1], [0], [0], [1], [0, 0, 1, 1], [], []>} : vector<8x4xf32>, vector<4x768xf32>, vector<8x768xf32> -> vector<8x768xf32>
    %40 = arith.addf %35, %39 : vector<8x768xf32>
    %c0_35 = arith.constant 0 : index
    %c38 = arith.constant 38 : index
    %41 = vector.load %arg1[%c0_35, %c38] : memref<4x896xf32, #tpu.memory_space<vmem>>, vector<4x768xf32>
    %c8 = arith.constant 8 : index
    %c0_36 = arith.constant 0 : index
    %c0_37 = arith.constant 0 : index
    %42 = vector.load %arg2[%c8, %c0_36, %c0_37] : memref<9x8x4xf32, #tpu.memory_space<vmem>>, vector<1x8x4xf32>
    %43 = vector.shape_cast %42 : vector<1x8x4xf32> to vector<8x4xf32>
    %cst_38 = arith.constant dense<0.000000e+00> : vector<8x768xf32>
    %44 = tpu.matmul %43, %41, %cst_38 {dimension_numbers = #tpu.dot_dimension_numbers<[1], [0], [0], [1], [0, 0, 1, 1], [], []>} : vector<8x4xf32>, vector<4x768xf32>, vector<8x768xf32> -> vector<8x768xf32>
    %45 = arith.addf %40, %44 : vector<8x768xf32>
    %c0_39 = arith.constant 0 : index
    %c0_40 = arith.constant 0 : index
    %46 = vector.load %arg3[%c0_39, %c0_40] : memref<8x1xf32, #tpu.memory_space<vmem>>, vector<8x1xf32>
    %47 = vector.broadcast %46 : vector<8x1xf32> to vector<8x768xf32>
    %48 = arith.addf %45, %47 : vector<8x768xf32>
    %49 = tpu.iota {dimensions = array<i32: 1>} : vector<1x768xi32>
    %c384_i32 = arith.constant 384 : i32
    %c0_i32 = arith.constant 0 : i32
    %50 = arith.cmpi eq, %c384_i32, %c0_i32 : i32
    %c1_i32 = arith.constant 1 : i32
    %51 = arith.select %50, %c1_i32, %c384_i32 : i32
    %52 = vector.broadcast %51 : i32 to vector<1x768xi32>
    %53 = arith.remsi %49, %52 : vector<1x768xi32>
    %c0_i32_41 = arith.constant 0 : i32
    %54 = vector.broadcast %c0_i32_41 : i32 to vector<1x768xi32>
    %55 = arith.cmpi ne, %53, %54 : vector<1x768xi32>
    %c0_i32_42 = arith.constant 0 : i32
    %56 = vector.broadcast %c0_i32_42 : i32 to vector<1x768xi32>
    %57 = arith.cmpi slt, %53, %56 : vector<1x768xi32>
    %c0_i32_43 = arith.constant 0 : i32
    %58 = arith.cmpi slt, %51, %c0_i32_43 : i32
    %59 = vector.broadcast %58 : i1 to vector<1x768xi1>
    %60 = vector.broadcast %59 : vector<1x768xi1> to vector<1x768xi1>
    %61 = arith.xori %57, %60 : vector<1x768xi1>
    %62 = arith.andi %61, %55 : vector<1x768xi1>
    %63 = vector.broadcast %51 : i32 to vector<1x768xi32>
    %64 = arith.addi %53, %63 : vector<1x768xi32>
    %65 = arith.select %62, %64, %53 : vector<1x768xi1>, vector<1x768xi32>
    %c288_i32 = arith.constant 288 : i32
    %66 = vector.broadcast %c288_i32 : i32 to vector<1x768xi32>
    %67 = arith.cmpi slt, %65, %66 : vector<1x768xi32>
    %c18_i32 = arith.constant 18 : i32
    %c0_i32_44 = arith.constant 0 : i32
    %68 = arith.cmpi eq, %c18_i32, %c0_i32_44 : i32
    %c1_i32_45 = arith.constant 1 : i32
    %69 = arith.select %68, %c1_i32_45, %c18_i32 : i32
    %70 = vector.broadcast %69 : i32 to vector<1x768xi32>
    %71 = arith.remsi %65, %70 : vector<1x768xi32>
    %c0_i32_46 = arith.constant 0 : i32
    %72 = vector.broadcast %c0_i32_46 : i32 to vector<1x768xi32>
    %73 = arith.cmpi ne, %71, %72 : vector<1x768xi32>
    %c0_i32_47 = arith.constant 0 : i32
    %74 = vector.broadcast %c0_i32_47 : i32 to vector<1x768xi32>
    %75 = arith.cmpi slt, %71, %74 : vector<1x768xi32>
    %c0_i32_48 = arith.constant 0 : i32
    %76 = arith.cmpi slt, %69, %c0_i32_48 : i32
    %77 = vector.broadcast %76 : i1 to vector<1x768xi1>
    %78 = vector.broadcast %77 : vector<1x768xi1> to vector<1x768xi1>
    %79 = arith.xori %75, %78 : vector<1x768xi1>
    %80 = arith.andi %79, %73 : vector<1x768xi1>
    %81 = vector.broadcast %69 : i32 to vector<1x768xi32>
    %82 = arith.addi %71, %81 : vector<1x768xi32>
    %83 = arith.select %80, %82, %71 : vector<1x768xi1>, vector<1x768xi32>
    %c16_i32 = arith.constant 16 : i32
    %84 = vector.broadcast %c16_i32 : i32 to vector<1x768xi32>
    %85 = arith.cmpi slt, %83, %84 : vector<1x768xi32>
    %86 = arith.andi %67, %85 : vector<1x768xi1>
    %87 = arith.extui %86 : vector<1x768xi1> to vector<1x768xi32>
    %88 = arith.sitofp %87 : vector<1x768xi32> to vector<1x768xf32>
    %89 = vector.broadcast %88 : vector<1x768xf32> to vector<8x768xf32>
    %90 = arith.mulf %48, %89 : vector<8x768xf32>
    %cst_49 = arith.constant dense<0.000000e+00> : vector<8xf32>
    %91 = vector.multi_reduction <add>, %90, %cst_49 [1] : vector<8x768xf32> to vector<8xf32>
    %92 = vector.shape_cast %91 : vector<8xf32> to vector<8x1xf32>
    %93 = arith.mulf %90, %48 : vector<8x768xf32>
    %cst_50 = arith.constant dense<0.000000e+00> : vector<8xf32>
    %94 = vector.multi_reduction <add>, %93, %cst_50 [1] : vector<8x768xf32> to vector<8xf32>
    %95 = vector.shape_cast %94 : vector<8xf32> to vector<8x1xf32>
    %cst_51 = arith.constant 0.001953125 : f32
    %96 = vector.broadcast %cst_51 : f32 to vector<8x1xf32>
    %97 = arith.mulf %92, %96 : vector<8x1xf32>
    %cst_52 = arith.constant 0.001953125 : f32
    %98 = vector.broadcast %cst_52 : f32 to vector<8x1xf32>
    %99 = arith.mulf %95, %98 : vector<8x1xf32>
    %100 = arith.mulf %97, %97 : vector<8x1xf32>
    %101 = arith.subf %99, %100 : vector<8x1xf32>
    %cst_53 = arith.constant 9.99999974E-6 : f32
    %102 = vector.broadcast %cst_53 : f32 to vector<8x1xf32>
    %103 = arith.addf %101, %102 : vector<8x1xf32>
    %104 = math.rsqrt %103 : vector<8x1xf32>
    %c0_54 = arith.constant 0 : index
    %c0_55 = arith.constant 0 : index
    %105 = vector.load %arg4[%c0_54, %c0_55] : memref<8x1xf32, #tpu.memory_space<vmem>>, vector<8x1xf32>
    %106 = arith.mulf %105, %104 : vector<8x1xf32>
    %c0_56 = arith.constant 0 : index
    %c0_57 = arith.constant 0 : index
    %107 = vector.load %arg5[%c0_56, %c0_57] : memref<8x1xf32, #tpu.memory_space<vmem>>, vector<8x1xf32>
    %108 = arith.mulf %97, %106 : vector<8x1xf32>
    %109 = arith.subf %107, %108 : vector<8x1xf32>
    %110 = vector.broadcast %106 : vector<8x1xf32> to vector<8x768xf32>
    %111 = arith.mulf %48, %110 : vector<8x768xf32>
    %112 = vector.broadcast %109 : vector<8x1xf32> to vector<8x768xf32>
    %113 = arith.addf %111, %112 : vector<8x768xf32>
    %cst_58 = arith.constant 0.000000e+00 : f32
    %114 = vector.broadcast %cst_58 : f32 to vector<8x768xf32>
    %115 = arith.maximumf %113, %114 : vector<8x768xf32>
    %116 = vector.extract_strided_slice %115 {offsets = [0, 0], sizes = [8, 384], strides = [1, 1]} : vector<8x768xf32> to vector<8x384xf32>
    %c0_59 = arith.constant 0 : index
    %c0_60 = arith.constant 0 : index
    %c0_61 = arith.constant 0 : index
    %117 = vector.load %arg6[%c0_59, %c0_60, %c0_61] : memref<2x8x384xf32, #tpu.memory_space<vmem>>, vector<1x8x384xf32>
    %118 = vector.shape_cast %117 : vector<1x8x384xf32> to vector<8x384xf32>
    %119 = vector.shape_cast %116 : vector<8x384xf32> to vector<1x8x384xf32>
    tpu.vector_store %arg6[%c0_59, %c0_60, %c0_61], %119 {strides = array<i32>} : memref<2x8x384xf32, #tpu.memory_space<vmem>>, vector<1x8x384xf32>,
    %120 = vector.extract_strided_slice %115 {offsets = [0, 384], sizes = [8, 384], strides = [1, 1]} : vector<8x768xf32> to vector<8x384xf32>
    %c1_62 = arith.constant 1 : index
    %c0_63 = arith.constant 0 : index
    %c0_64 = arith.constant 0 : index
    %121 = vector.load %arg6[%c1_62, %c0_63, %c0_64] : memref<2x8x384xf32, #tpu.memory_space<vmem>>, vector<1x8x384xf32>
    %122 = vector.shape_cast %121 : vector<1x8x384xf32> to vector<8x384xf32>
    %123 = vector.shape_cast %120 : vector<8x384xf32> to vector<1x8x384xf32>
    tpu.vector_store %arg6[%c1_62, %c0_63, %c0_64], %123 {strides = array<i32>} : memref<2x8x384xf32, #tpu.memory_space<vmem>>, vector<1x8x384xf32>,
    return
  }
  func.func @transform_0(%arg0: i32) -> (i32, i32) {
    %c0_i32 = arith.constant 0 : i32
    %c0_i32_0 = arith.constant 0 : i32
    %c0_i32_1 = arith.constant 0 : i32
    return %c0_i32, %c0_i32_0 : i32, i32
  }
  func.func @transform_1(%arg0: i32) -> (i32, i32, i32) {
    %c0_i32 = arith.constant 0 : i32
    %c0_i32_0 = arith.constant 0 : i32
    %c0_i32_1 = arith.constant 0 : i32
    %c0_i32_2 = arith.constant 0 : i32
    return %c0_i32, %c0_i32_0, %c0_i32_1 : i32, i32, i32
  }
  func.func @transform_2(%arg0: i32) -> (i32, i32) {
    %c0_i32 = arith.constant 0 : i32
    %c0_i32_0 = arith.constant 0 : i32
    %c0_i32_1 = arith.constant 0 : i32
    return %c0_i32, %c0_i32_0 : i32, i32
  }
  func.func @transform_3(%arg0: i32) -> (i32, i32) {
    %c0_i32 = arith.constant 0 : i32
    %c0_i32_0 = arith.constant 0 : i32
    %c0_i32_1 = arith.constant 0 : i32
    return %c0_i32, %c0_i32_0 : i32, i32
  }
  func.func @transform_4(%arg0: i32) -> (i32, i32) {
    %c0_i32 = arith.constant 0 : i32
    %c0_i32_0 = arith.constant 0 : i32
    %c0_i32_1 = arith.constant 0 : i32
    return %c0_i32, %c0_i32_0 : i32, i32
  }
  func.func @transform_5(%arg0: i32) -> (i32, i32, i32) {
    %c0_i32 = arith.constant 0 : i32
    %c0_i32_0 = arith.constant 0 : i32
    %c0_i32_1 = arith.constant 0 : i32
    %c0_i32_2 = arith.constant 0 : i32
    return %c0_i32, %c0_i32_0, %c0_i32_1 : i32, i32, i32
  }
}

</mosaic_0001>

<llo_original>
// kernel: single_conv_forward.1
$region0: #{single_conv_forward.1}
  #allocation0 [shape = 'u32[]', space=smem, size = 0x4, offset = 0x4, fixed_abs, tag = 'smem constant byte address 0x4 - core index']
  #allocation1 [shape = 'u32[144,128]{1,0:T(1,128)}', space=vmem, size = 0x12000, scoped, tag = 'internal scratch']
  %s0 = inlined_call_operand.vmem [shape: f32[4,896], index: 0, kind: input, shape index: {}]
  %s1 = inlined_call_operand.vmem [shape: f32[9,8,4], index: 1, kind: input, shape index: {}]
  %s2 = inlined_call_operand.vmem [shape: f32[8,1], index: 2, kind: input, shape index: {}]
  %s3 = inlined_call_operand.vmem [shape: f32[8,1], index: 3, kind: input, shape index: {}]
  %s4 = inlined_call_operand.vmem [shape: f32[8,1], index: 4, kind: input, shape index: {}]
  %s5 = inlined_call_operand.vmem [shape: f32[2,8,384], index: 5, kind: output, shape index: {}]
  %s6 = sld [smem:[#allocation0]]
  $region30: #{single_conv_forward.1} parent=0
    _
  %s8 = ssub.s32 1, %s6
  %s9 = scalar_select 0, %s8, %s6
  // Predicated region
  $region2: #{single_conv_forward.1} parent=0 // pred_check
    _
  $region3: #{single_conv_forward.1} parent=0 // pred_check_branch
    %11 = sbr.rel (0) target = $region5
  $region4: #{single_conv_forward.1} parent=0 // pred_region
    _
  $region5: #{single_conv_forward.1} parent=0 // pred_fallthru
    _
  // Predicated region
  $region6: #{single_conv_forward.1} parent=0 // pred_check
    _
  $region7: #{single_conv_forward.1} parent=0 // pred_check_branch
    %13 = sbr.rel (0) target = $region9
  $region8: #{single_conv_forward.1} parent=0 // pred_region
    _
  $region9: #{single_conv_forward.1} parent=0 // pred_fallthru
    _
  // Predicated region
  $region10: #{single_conv_forward.1} parent=0 // pred_check
    _
  $region11: #{single_conv_forward.1} parent=0 // pred_check_branch
    %15 = sbr.rel (0) target = $region13
  $region12: #{single_conv_forward.1} parent=0 // pred_region
    _
  $region13: #{single_conv_forward.1} parent=0 // pred_fallthru
    _
  // Predicated region
  $region14: #{single_conv_forward.1} parent=0 // pred_check
    _
  $region15: #{single_conv_forward.1} parent=0 // pred_check_branch
    %17 = sbr.rel (0) target = $region17
  $region16: #{single_conv_forward.1} parent=0 // pred_region
    _
  $region17: #{single_conv_forward.1} parent=0 // pred_fallthru
    _
  // Predicated region
  $region18: #{single_conv_forward.1} parent=0 // pred_check
    _
  $region19: #{single_conv_forward.1} parent=0 // pred_check_branch
    %19 = sbr.rel (0) target = $region21
  $region20: #{single_conv_forward.1} parent=0 // pred_region
    _
  $region21: #{single_conv_forward.1} parent=0 // pred_fallthru
    _
  %v20 = vld [vmem:[%s0] sm:$0xff]
  %v21 = vld [vmem:[%s0 + $0x8] sm:$0xff]
  %v22 = vld [vmem:[%s0 + $0x10] sm:$0xff]
  %v23 = vld [vmem:[%s1] sm:$0xff]
  %v24 = vld [vmem:[%s0] sm:$0xff]
  %v25 = vld [vmem:[%s0 + $0x8] sm:$0xff]
  %v26 = vld [vmem:[%s0 + $0x10] sm:$0xff]
  %v27 = vld [vmem:[%s0 + $0x18] sm:$0xf]
  %s28 = scalar_lea.vmem %s1, 8
  %v29 = vld [vmem:[%s28] sm:$0xff]
  %v34 = vcombine.high %v24, %v24
  %v35 = vcombine.high %v25, %v25
  %v36 = vcombine.high %v26, %v26
  %37 = vrot.lane.b32.xlu0 %v24, 127
  %v38 = vpop.permute.xlu0 %37
  %39 = vrot.lane.b32.xlu0 %v34, 127
  %v40 = vpop.permute.xlu0 %39
  %41 = vrot.lane.b32.xlu0 %v25, 127
  %v42 = vpop.permute.xlu0 %41
  %43 = vrot.lane.b32.xlu0 %v35, 127
  %v44 = vpop.permute.xlu0 %43
  %45 = vrot.lane.b32.xlu0 %v26, 127
  %v46 = vpop.permute.xlu0 %45
  %47 = vrot.lane.b32.xlu0 %v36, 127
  %v48 = vpop.permute.xlu0 %47
  %49 = vrot.lane.b32.xlu0 %v27, 127
  %v50 = vpop.permute.xlu0 %49
  %vm51 = vcmask 1039360
  %v52 = vsel %vm51, %v38, %v40
  %v53 = vsel %vm51, %v40, %v42
  %v54 = vsel %vm51, %v42, %v44
  %v55 = vsel %vm51, %v44, %v46
  %v56 = vsel %vm51, %v46, %v48
  %v57 = vsel %vm51, %v48, %v50
  %vm58 = vcmask 31744
  %v60 = vsel %vm58, %v29, 0
  %vm62 = vcmask 1043456
  %v63 = vsel %vm62, %v52, 0
  %v65 = vsel %vm62, %v53, 0
  %v67 = vsel %vm62, %v54, 0
  %v69 = vsel %vm62, %v55, 0
  %v71 = vsel %vm62, %v56, 0
  %v73 = vsel %vm62, %v57, 0
  %75 = vmatprep.subr.mxu0 0.0
  %76 = vmatpush1.msra.mxu0 0.0
  %77 = vmatprep.subr.mxu0 0.0
  %78 = vmatpush1.msra.mxu0 0.0
  %79 = vmatprep.subr.mxu0 0.0
  %80 = vmatpush1.msra.mxu0 0.0
  %81 = vmatprep.subr.mxu0 0.0
  %82 = vmatpush1.msra.mxu0 0.0
  %83 = vmatprep.subr.mxu0 0.0
  %84 = vmatpush1.msra.mxu0 0.0
  %85 = vmatprep.subr.mxu0 0.0
  %86 = vmatpush1.msra.mxu0 0.0
  %87 = vmatprep.subr.mxu0 0.0
  %88 = vmatpush1.msra.mxu0 0.0
  %89 = vmatprep.subr.mxu0 0.0
  %90 = vmatpush1.msra.mxu0 0.0
  %91 = vmatprep.subr.mxu0 0.0
  %92 = vmatpush1.msra.mxu0 0.0
  %93 = vmatprep.subr.mxu0 0.0
  %94 = vmatpush1.msra.mxu0 0.0
  %95 = vmatprep.subr.mxu0 0.0
  %96 = vmatpush1.msra.mxu0 0.0
  %97 = vmatprep.subr.mxu0 0.0
  %98 = vmatpush1.msra.mxu0 0.0
  %99 = vmatprep.subr.mxu0 0.0
  %100 = vmatpush1.msra.mxu0 0.0
  %101 = vmatprep.subr.mxu0 0.0
  %102 = vmatpush1.msra.mxu0 0.0
  %103 = vmatprep.subr.mxu0 0.0
  %104 = vmatpush1.msra.mxu0 0.0
  %105 = vmatprep.subr.mxu0 %v65
  %106 = vmatpush1.msra.mxu0 %v63
  %107 = vmatprep.subr.mxu0 0.0
  %108 = vmatpush2.msra.mxu0 0.0
  %109 = vmatprep.subr.mxu0 0.0
  %110 = vmatpush2.msra.mxu0 0.0
  %111 = vmatprep.subr.mxu0 0.0
  %112 = vmatpush2.msra.mxu0 0.0
  %113 = vmatprep.subr.mxu0 0.0
  %114 = vmatpush2.msra.mxu0 0.0
  %115 = vmatprep.subr.mxu0 0.0
  %116 = vmatpush2.msra.mxu0 0.0
  %117 = vmatprep.subr.mxu0 0.0
  %118 = vmatpush2.msra.mxu0 0.0
  %119 = vmatprep.subr.mxu0 0.0
  %120 = vmatpush2.msra.mxu0 0.0
  %121 = vmatprep.subr.mxu0 0.0
  %122 = vmatpush2.msra.mxu0 0.0
  %123 = vmatprep.subr.mxu0 0.0
  %124 = vmatpush2.msra.mxu0 0.0
  %125 = vmatprep.subr.mxu0 0.0
  %126 = vmatpush2.msra.mxu0 0.0
  %127 = vmatprep.subr.mxu0 0.0
  %128 = vmatpush2.msra.mxu0 0.0
  %129 = vmatprep.subr.mxu0 0.0
  %130 = vmatpush2.msra.mxu0 0.0
  %131 = vmatprep.subr.mxu0 0.0
  %132 = vmatpush2.msra.mxu0 0.0
  %133 = vmatprep.subr.mxu0 0.0
  %134 = vmatpush2.msra.mxu0 0.0
  %135 = vmatprep.subr.mxu0 0.0
  %136 = vmatpush2.msra.mxu0 0.0
  %137 = vmatprep.subr.mxu0 0.0
  %138 = vmatpush2.msra.mxu0 0.0
  %139 = vmatprep.mubr.f32.mxu0 0.0
  %140 = vmatmul.mubr.f32.gmra.mxu0 %v60
  %v141 = vpop.f32.mrf.mxu0
  %v142 = vadd.f32 0.0, %v141
  %v143 = vpop.f32.mrf.mxu0
  %v144 = vadd.f32 0.0, %v143
  %145 = vdwg.mxu0
  %146 = vmatprep.subr.mxu0 0.0
  %147 = vmatpush1.msra.mxu0 0.0
  %148 = vmatprep.subr.mxu0 0.0
  %149 = vmatpush1.msra.mxu0 0.0
  %150 = vmatprep.subr.mxu0 0.0
  %151 = vmatpush1.msra.mxu0 0.0
  %152 = vmatprep.subr.mxu0 0.0
  %153 = vmatpush1.msra.mxu0 0.0
  %154 = vmatprep.subr.mxu0 0.0
  %155 = vmatpush1.msra.mxu0 0.0
  %156 = vmatprep.subr.mxu0 0.0
  %157 = vmatpush1.msra.mxu0 0.0
  %158 = vmatprep.subr.mxu0 0.0
  %159 = vmatpush1.msra.mxu0 0.0
  %160 = vmatprep.subr.mxu0 0.0
  %161 = vmatpush1.msra.mxu0 0.0
  %162 = vmatprep.subr.mxu0 0.0
  %163 = vmatpush1.msra.mxu0 0.0
  %164 = vmatprep.subr.mxu0 0.0
  %165 = vmatpush1.msra.mxu0 0.0
  %166 = vmatprep.subr.mxu0 0.0
  %167 = vmatpush1.msra.mxu0 0.0
  %168 = vmatprep.subr.mxu0 0.0
  %169 = vmatpush1.msra.mxu0 0.0
  %170 = vmatprep.subr.mxu0 0.0
  %171 = vmatpush1.msra.mxu0 0.0
  %172 = vmatprep.subr.mxu0 0.0
  %173 = vmatpush1.msra.mxu0 0.0
  %174 = vmatprep.subr.mxu0 0.0
  %175 = vmatpush1.msra.mxu0 0.0
  %176 = vmatprep.subr.mxu0 %v69
  %177 = vmatpush1.msra.mxu0 %v67
  %178 = vmatprep.subr.mxu0 0.0
  %179 = vmatpush2.msra.mxu0 0.0
  %180 = vmatprep.subr.mxu0 0.0
  %181 = vmatpush2.msra.mxu0 0.0
  %182 = vmatprep.subr.mxu0 0.0
  %183 = vmatpush2.msra.mxu0 0.0
  %184 = vmatprep.subr.mxu0 0.0
  %185 = vmatpush2.msra.mxu0 0.0
  %186 = vmatprep.subr.mxu0 0.0
  %187 = vmatpush2.msra.mxu0 0.0
  %188 = vmatprep.subr.mxu0 0.0
  %189 = vmatpush2.msra.mxu0 0.0
  %190 = vmatprep.subr.mxu0 0.0
  %191 = vmatpush2.msra.mxu0 0.0
  %192 = vmatprep.subr.mxu0 0.0
  %193 = vmatpush2.msra.mxu0 0.0
  %194 = vmatprep.subr.mxu0 0.0
  %195 = vmatpush2.msra.mxu0 0.0
  %196 = vmatprep.subr.mxu0 0.0
  %197 = vmatpush2.msra.mxu0 0.0
  %198 = vmatprep.subr.mxu0 0.0
  %199 = vmatpush2.msra.mxu0 0.0
  %200 = vmatprep.subr.mxu0 0.0
  %201 = vmatpush2.msra.mxu0 0.0
  %202 = vmatprep.subr.mxu0 0.0
  %203 = vmatpush2.msra.mxu0 0.0
  %204 = vmatprep.subr.mxu0 0.0
  %205 = vmatpush2.msra.mxu0 0.0
  %206 = vmatprep.subr.mxu0 0.0
  %207 = vmatpush2.msra.mxu0 0.0
  %208 = vmatprep.subr.mxu0 0.0
  %209 = vmatpush2.msra.mxu0 0.0
  %210 = vmatprep.mubr.f32.mxu0 0.0
  %211 = vmatmul.mubr.f32.gmra.mxu0 %v60
  %v212 = vpop.f32.mrf.mxu0
  %v213 = vadd.f32 0.0, %v212
  %v214 = vpop.f32.mrf.mxu0
  %v215 = vadd.f32 0.0, %v214
  %216 = vdwg.mxu0
  %217 = vmatprep.subr.mxu0 0.0
  %218 = vmatpush1.msra.mxu0 0.0
  %219 = vmatprep.subr.mxu0 0.0
  %220 = vmatpush1.msra.mxu0 0.0
  %221 = vmatprep.subr.mxu0 0.0
  %222 = vmatpush1.msra.mxu0 0.0
  %223 = vmatprep.subr.mxu0 0.0
  %224 = vmatpush1.msra.mxu0 0.0
  %225 = vmatprep.subr.mxu0 0.0
  %226 = vmatpush1.msra.mxu0 0.0
  %227 = vmatprep.subr.mxu0 0.0
  %228 = vmatpush1.msra.mxu0 0.0
  %229 = vmatprep.subr.mxu0 0.0
  %230 = vmatpush1.msra.mxu0 0.0
  %231 = vmatprep.subr.mxu0 0.0
  %232 = vmatpush1.msra.mxu0 0.0
  %233 = vmatprep.subr.mxu0 0.0
  %234 = vmatpush1.msra.mxu0 0.0
  %235 = vmatprep.subr.mxu0 0.0
  %236 = vmatpush1.msra.mxu0 0.0
  %237 = vmatprep.subr.mxu0 0.0
  %238 = vmatpush1.msra.mxu0 0.0
  %239 = vmatprep.subr.mxu0 0.0
  %240 = vmatpush1.msra.mxu0 0.0
  %241 = vmatprep.subr.mxu0 0.0
  %242 = vmatpush1.msra.mxu0 0.0
  %243 = vmatprep.subr.mxu0 0.0
  %244 = vmatpush1.msra.mxu0 0.0
  %245 = vmatprep.subr.mxu0 0.0
  %246 = vmatpush1.msra.mxu0 0.0
  %247 = vmatprep.subr.mxu0 %v73
  %248 = vmatpush1.msra.mxu0 %v71
  %249 = vmatprep.subr.mxu0 0.0
  %250 = vmatpush2.msra.mxu0 0.0
  %251 = vmatprep.subr.mxu0 0.0
  %252 = vmatpush2.msra.mxu0 0.0
  %253 = vmatprep.subr.mxu0 0.0
  %254 = vmatpush2.msra.mxu0 0.0
  %255 = vmatprep.subr.mxu0 0.0
  %256 = vmatpush2.msra.mxu0 0.0
  %257 = vmatprep.subr.mxu0 0.0
  %258 = vmatpush2.msra.mxu0 0.0
  %259 = vmatprep.subr.mxu0 0.0
  %260 = vmatpush2.msra.mxu0 0.0
  %261 = vmatprep.subr.mxu0 0.0
  %262 = vmatpush2.msra.mxu0 0.0
  %263 = vmatprep.subr.mxu0 0.0
  %264 = vmatpush2.msra.mxu0 0.0
  %265 = vmatprep.subr.mxu0 0.0
  %266 = vmatpush2.msra.mxu0 0.0
  %267 = vmatprep.subr.mxu0 0.0
  %268 = vmatpush2.msra.mxu0 0.0
  %269 = vmatprep.subr.mxu0 0.0
  %270 = vmatpush2.msra.mxu0 0.0
  %271 = vmatprep.subr.mxu0 0.0
  %272 = vmatpush2.msra.mxu0 0.0
  %273 = vmatprep.subr.mxu0 0.0
  %274 = vmatpush2.msra.mxu0 0.0
  %275 = vmatprep.subr.mxu0 0.0
  %276 = vmatpush2.msra.mxu0 0.0
  %277 = vmatprep.subr.mxu0 0.0
  %278 = vmatpush2.msra.mxu0 0.0
  %279 = vmatprep.subr.mxu0 0.0
  %280 = vmatpush2.msra.mxu0 0.0
  %281 = vmatprep.mubr.f32.mxu0 0.0
  %282 = vmatmul.mubr.f32.gmra.mxu0 %v60
  %v283 = vpop.f32.mrf.mxu0
  %v284 = vadd.f32 0.0, %v283
  %v285 = vpop.f32.mrf.mxu0
  %v286 = vadd.f32 0.0, %v285
  %287 = vdwg.mxu0
  %v291 = vcombine.high %v20, %v20
  %v292 = vcombine.high %v21, %v21
  %v293 = vcombine.high %v22, %v22
  %v295 = vsel %vm58, %v23, 0
  %v297 = vsel %vm62, %v20, 0
  %v299 = vsel %vm62, %v291, 0
  %v301 = vsel %vm62, %v21, 0
  %v303 = vsel %vm62, %v292, 0
  %v305 = vsel %vm62, %v22, 0
  %v307 = vsel %vm62, %v293, 0
  %309 = vmatprep.subr.mxu0 0.0
  %310 = vmatpush1.msra.mxu0 0.0
  %311 = vmatprep.subr.mxu0 0.0
  %312 = vmatpush1.msra.mxu0 0.0
  %313 = vmatprep.subr.mxu0 0.0
  %314 = vmatpush1.msra.mxu0 0.0
  %315 = vmatprep.subr.mxu0 0.0
  %316 = vmatpush1.msra.mxu0 0.0
  %317 = vmatprep.subr.mxu0 0.0
  %318 = vmatpush1.msra.mxu0 0.0
  %319 = vmatprep.subr.mxu0 0.0
  %320 = vmatpush1.msra.mxu0 0.0
  %321 = vmatprep.subr.mxu0 0.0
  %322 = vmatpush1.msra.mxu0 0.0
  %323 = vmatprep.subr.mxu0 0.0
  %324 = vmatpush1.msra.mxu0 0.0
  %325 = vmatprep.subr.mxu0 0.0
  %326 = vmatpush1.msra.mxu0 0.0
  %327 = vmatprep.subr.mxu0 0.0
  %328 = vmatpush1.msra.mxu0 0.0
  %329 = vmatprep.subr.mxu0 0.0
  %330 = vmatpush1.msra.mxu0 0.0
  %331 = vmatprep.subr.mxu0 0.0
  %332 = vmatpush1.msra.mxu0 0.0
  %333 = vmatprep.subr.mxu0 0.0
  %334 = vmatpush1.msra.mxu0 0.0
  %335 = vmatprep.subr.mxu0 0.0
  %336 = vmatpush1.msra.mxu0 0.0
  %337 = vmatprep.subr.mxu0 0.0
  %338 = vmatpush1.msra.mxu0 0.0
  %339 = vmatprep.subr.mxu0 %v299
  %340 = vmatpush1.msra.mxu0 %v297
  %341 = vmatprep.subr.mxu0 0.0
  %342 = vmatpush2.msra.mxu0 0.0
  %343 = vmatprep.subr.mxu0 0.0
  %344 = vmatpush2.msra.mxu0 0.0
  %345 = vmatprep.subr.mxu0 0.0
  %346 = vmatpush2.msra.mxu0 0.0
  %347 = vmatprep.subr.mxu0 0.0
  %348 = vmatpush2.msra.mxu0 0.0
  %349 = vmatprep.subr.mxu0 0.0
  %350 = vmatpush2.msra.mxu0 0.0
  %351 = vmatprep.subr.mxu0 0.0
  %352 = vmatpush2.msra.mxu0 0.0
  %353 = vmatprep.subr.mxu0 0.0
  %354 = vmatpush2.msra.mxu0 0.0
  %355 = vmatprep.subr.mxu0 0.0
  %356 = vmatpush2.msra.mxu0 0.0
  %357 = vmatprep.subr.mxu0 0.0
  %358 = vmatpush2.msra.mxu0 0.0
  %359 = vmatprep.subr.mxu0 0.0
  %360 = vmatpush2.msra.mxu0 0.0
  %361 = vmatprep.subr.mxu0 0.0
  %362 = vmatpush2.msra.mxu0 0.0
  %363 = vmatprep.subr.mxu0 0.0
  %364 = vmatpush2.msra.mxu0 0.0
  %365 = vmatprep.subr.mxu0 0.0
  %366 = vmatpush2.msra.mxu0 0.0
  %367 = vmatprep.subr.mxu0 0.0
  %368 = vmatpush2.msra.mxu0 0.0
  %369 = vmatprep.subr.mxu0 0.0
  %370 = vmatpush2.msra.mxu0 0.0
  %371 = vmatprep.subr.mxu0 0.0
  %372 = vmatpush2.msra.mxu0 0.0
  %373 = vmatprep.mubr.f32.mxu0 0.0
  %374 = vmatmul.mubr.f32.gmra.mxu0 %v295
  %v375 = vpop.f32.mrf.mxu0
  %v376 = vadd.f32 %v142, %v375
  %v377 = vpop.f32.mrf.mxu0
  %v378 = vadd.f32 %v144, %v377
  %379 = vdwg.mxu0
  %380 = vmatprep.subr.mxu0 0.0
  %381 = vmatpush1.msra.mxu0 0.0
  %382 = vmatprep.subr.mxu0 0.0
  %383 = vmatpush1.msra.mxu0 0.0
  %384 = vmatprep.subr.mxu0 0.0
  %385 = vmatpush1.msra.mxu0 0.0
  %386 = vmatprep.subr.mxu0 0.0
  %387 = vmatpush1.msra.mxu0 0.0
  %388 = vmatprep.subr.mxu0 0.0
  %389 = vmatpush1.msra.mxu0 0.0
  %390 = vmatprep.subr.mxu0 0.0
  %391 = vmatpush1.msra.mxu0 0.0
  %392 = vmatprep.subr.mxu0 0.0
  %393 = vmatpush1.msra.mxu0 0.0
  %394 = vmatprep.subr.mxu0 0.0
  %395 = vmatpush1.msra.mxu0 0.0
  %396 = vmatprep.subr.mxu0 0.0
  %397 = vmatpush1.msra.mxu0 0.0
  %398 = vmatprep.subr.mxu0 0.0
  %399 = vmatpush1.msra.mxu0 0.0
  %400 = vmatprep.subr.mxu0 0.0
  %401 = vmatpush1.msra.mxu0 0.0
  %402 = vmatprep.subr.mxu0 0.0
  %403 = vmatpush1.msra.mxu0 0.0
  %404 = vmatprep.subr.mxu0 0.0
  %405 = vmatpush1.msra.mxu0 0.0
  %406 = vmatprep.subr.mxu0 0.0
  %407 = vmatpush1.msra.mxu0 0.0
  %408 = vmatprep.subr.mxu0 0.0
  %409 = vmatpush1.msra.mxu0 0.0
  %410 = vmatprep.subr.mxu0 %v303
  %411 = vmatpush1.msra.mxu0 %v301
  %412 = vmatprep.subr.mxu0 0.0
  %413 = vmatpush2.msra.mxu0 0.0
  %414 = vmatprep.subr.mxu0 0.0
  %415 = vmatpush2.msra.mxu0 0.0
  %416 = vmatprep.subr.mxu0 0.0
  %417 = vmatpush2.msra.mxu0 0.0
  %418 = vmatprep.subr.mxu0 0.0
  %419 = vmatpush2.msra.mxu0 0.0
  %420 = vmatprep.subr.mxu0 0.0
  %421 = vmatpush2.msra.mxu0 0.0
  %422 = vmatprep.subr.mxu0 0.0
  %423 = vmatpush2.msra.mxu0 0.0
  %424 = vmatprep.subr.mxu0 0.0
  %425 = vmatpush2.msra.mxu0 0.0
  %426 = vmatprep.subr.mxu0 0.0
  %427 = vmatpush2.msra.mxu0 0.0
  %428 = vmatprep.subr.mxu0 0.0
  %429 = vmatpush2.msra.mxu0 0.0
  %430 = vmatprep.subr.mxu0 0.0
  %431 = vmatpush2.msra.mxu0 0.0
  %432 = vmatprep.subr.mxu0 0.0
  %433 = vmatpush2.msra.mxu0 0.0
  %434 = vmatprep.subr.mxu0 0.0
  %435 = vmatpush2.msra.mxu0 0.0
  %436 = vmatprep.subr.mxu0 0.0
  %437 = vmatpush2.msra.mxu0 0.0
  %438 = vmatprep.subr.mxu0 0.0
  %439 = vmatpush2.msra.mxu0 0.0
  %440 = vmatprep.subr.mxu0 0.0
  %441 = vmatpush2.msra.mxu0 0.0
  %442 = vmatprep.subr.mxu0 0.0
  %443 = vmatpush2.msra.mxu0 0.0
  %444 = vmatprep.mubr.f32.mxu0 0.0
  %445 = vmatmul.mubr.f32.gmra.mxu0 %v295
  %v446 = vpop.f32.mrf.mxu0
  %v447 = vadd.f32 %v213, %v446
  %v448 = vpop.f32.mrf.mxu0
  %v449 = vadd.f32 %v215, %v448
  %450 = vdwg.mxu0
  %451 = vmatprep.subr.mxu0 0.0
  %452 = vmatpush1.msra.mxu0 0.0
  %453 = vmatprep.subr.mxu0 0.0
  %454 = vmatpush1.msra.mxu0 0.0
  %455 = vmatprep.subr.mxu0 0.0
  %456 = vmatpush1.msra.mxu0 0.0
  %457 = vmatprep.subr.mxu0 0.0
  %458 = vmatpush1.msra.mxu0 0.0
  %459 = vmatprep.subr.mxu0 0.0
  %460 = vmatpush1.msra.mxu0 0.0
  %461 = vmatprep.subr.mxu0 0.0
  %462 = vmatpush1.msra.mxu0 0.0
  %463 = vmatprep.subr.mxu0 0.0
  %464 = vmatpush1.msra.mxu0 0.0
  %465 = vmatprep.subr.mxu0 0.0
  %466 = vmatpush1.msra.mxu0 0.0
  %467 = vmatprep.subr.mxu0 0.0
  %468 = vmatpush1.msra.mxu0 0.0
  %469 = vmatprep.subr.mxu0 0.0
  %470 = vmatpush1.msra.mxu0 0.0
  %471 = vmatprep.subr.mxu0 0.0
  %472 = vmatpush1.msra.mxu0 0.0
  %473 = vmatprep.subr.mxu0 0.0
  %474 = vmatpush1.msra.mxu0 0.0
  %475 = vmatprep.subr.mxu0 0.0
  %476 = vmatpush1.msra.mxu0 0.0
  %477 = vmatprep.subr.mxu0 0.0
  %478 = vmatpush1.msra.mxu0 0.0
  %479 = vmatprep.subr.mxu0 0.0
  %480 = vmatpush1.msra.mxu0 0.0
  %481 = vmatprep.subr.mxu0 %v307
  %482 = vmatpush1.msra.mxu0 %v305
  %483 = vmatprep.subr.mxu0 0.0
  %484 = vmatpush2.msra.mxu0 0.0
  %485 = vmatprep.subr.mxu0 0.0
  %486 = vmatpush2.msra.mxu0 0.0
  %487 = vmatprep.subr.mxu0 0.0
  %488 = vmatpush2.msra.mxu0 0.0
  %489 = vmatprep.subr.mxu0 0.0
  %490 = vmatpush2.msra.mxu0 0.0
  %491 = vmatprep.subr.mxu0 0.0
  %492 = vmatpush2.msra.mxu0 0.0
  %493 = vmatprep.subr.mxu0 0.0
  %494 = vmatpush2.msra.mxu0 0.0
  %495 = vmatprep.subr.mxu0 0.0
  %496 = vmatpush2.msra.mxu0 0.0
  %497 = vmatprep.subr.mxu0 0.0
  %498 = vmatpush2.msra.mxu0 0.0
  %499 = vmatprep.subr.mxu0 0.0
  %500 = vmatpush2.msra.mxu0 0.0
  %501 = vmatprep.subr.mxu0 0.0
  %502 = vmatpush2.msra.mxu0 0.0
  %503 = vmatprep.subr.mxu0 0.0
  %504 = vmatpush2.msra.mxu0 0.0
  %505 = vmatprep.subr.mxu0 0.0
  %506 = vmatpush2.msra.mxu0 0.0
  %507 = vmatprep.subr.mxu0 0.0
  %508 = vmatpush2.msra.mxu0 0.0
  %509 = vmatprep.subr.mxu0 0.0
  %510 = vmatpush2.msra.mxu0 0.0
  %511 = vmatprep.subr.mxu0 0.0
  %512 = vmatpush2.msra.mxu0 0.0
  %513 = vmatprep.subr.mxu0 0.0
  %514 = vmatpush2.msra.mxu0 0.0
  %515 = vmatprep.mubr.f32.mxu0 0.0
  %516 = vmatmul.mubr.f32.gmra.mxu0 %v295
  %v517 = vpop.f32.mrf.mxu0
  %v518 = vadd.f32 %v284, %v517
  %v519 = vpop.f32.mrf.mxu0
  %v520 = vadd.f32 %v286, %v519
  %521 = vdwg.mxu0
  %v522 = vld [vmem:[%s0] sm:$0xff]
  %v523 = vld [vmem:[%s0 + $0x8] sm:$0xff]
  %v524 = vld [vmem:[%s0 + $0x10] sm:$0xff]
  %v525 = vld [vmem:[%s0 + $0x18] sm:$0xf]
  %s526 = scalar_lea.vmem %s1, 16
  %v527 = vld [vmem:[%s526] sm:$0xff]
  %v532 = vcombine.high %v522, %v522
  %v533 = vcombine.high %v523, %v523
  %v534 = vcombine.high %v524, %v524
  %535 = vrot.lane.b32.xlu0 %v522, 126
  %v536 = vpop.permute.xlu0 %535
  %537 = vrot.lane.b32.xlu0 %v532, 126
  %v538 = vpop.permute.xlu0 %537
  %539 = vrot.lane.b32.xlu0 %v523, 126
  %v540 = vpop.permute.xlu0 %539
  %541 = vrot.lane.b32.xlu0 %v533, 126
  %v542 = vpop.permute.xlu0 %541
  %543 = vrot.lane.b32.xlu0 %v524, 126
  %v544 = vpop.permute.xlu0 %543
  %545 = vrot.lane.b32.xlu0 %v534, 126
  %v546 = vpop.permute.xlu0 %545
  %547 = vrot.lane.b32.xlu0 %v525, 126
  %v548 = vpop.permute.xlu0 %547
  %vm549 = vcmask 1031168
  %v550 = vsel %vm549, %v536, %v538
  %v551 = vsel %vm549, %v538, %v540
  %v552 = vsel %vm549, %v540, %v542
  %v553 = vsel %vm549, %v542, %v544
  %v554 = vsel %vm549, %v544, %v546
  %v555 = vsel %vm549, %v546, %v548
  %v557 = vsel %vm58, %v527, 0
  %v559 = vsel %vm62, %v550, 0
  %v561 = vsel %vm62, %v551, 0
  %v563 = vsel %vm62, %v552, 0
  %v565 = vsel %vm62, %v553, 0
  %v567 = vsel %vm62, %v554, 0
  %v569 = vsel %vm62, %v555, 0
  %571 = vmatprep.subr.mxu0 0.0
  %572 = vmatpush1.msra.mxu0 0.0
  %573 = vmatprep.subr.mxu0 0.0
  %574 = vmatpush1.msra.mxu0 0.0
  %575 = vmatprep.subr.mxu0 0.0
  %576 = vmatpush1.msra.mxu0 0.0
  %577 = vmatprep.subr.mxu0 0.0
  %578 = vmatpush1.msra.mxu0 0.0
  %579 = vmatprep.subr.mxu0 0.0
  %580 = vmatpush1.msra.mxu0 0.0
  %581 = vmatprep.subr.mxu0 0.0
  %582 = vmatpush1.msra.mxu0 0.0
  %583 = vmatprep.subr.mxu0 0.0
  %584 = vmatpush1.msra.mxu0 0.0
  %585 = vmatprep.subr.mxu0 0.0
  %586 = vmatpush1.msra.mxu0 0.0
  %587 = vmatprep.subr.mxu0 0.0
  %588 = vmatpush1.msra.mxu0 0.0
  %589 = vmatprep.subr.mxu0 0.0
  %590 = vmatpush1.msra.mxu0 0.0
  %591 = vmatprep.subr.mxu0 0.0
  %592 = vmatpush1.msra.mxu0 0.0
  %593 = vmatprep.subr.mxu0 0.0
  %594 = vmatpush1.msra.mxu0 0.0
  %595 = vmatprep.subr.mxu0 0.0
  %596 = vmatpush1.msra.mxu0 0.0
  %597 = vmatprep.subr.mxu0 0.0
  %598 = vmatpush1.msra.mxu0 0.0
  %599 = vmatprep.subr.mxu0 0.0
  %600 = vmatpush1.msra.mxu0 0.0
  %601 = vmatprep.subr.mxu0 %v561
  %602 = vmatpush1.msra.mxu0 %v559
  %603 = vmatprep.subr.mxu0 0.0
  %604 = vmatpush2.msra.mxu0 0.0
  %605 = vmatprep.subr.mxu0 0.0
  %606 = vmatpush2.msra.mxu0 0.0
  %607 = vmatprep.subr.mxu0 0.0
  %608 = vmatpush2.msra.mxu0 0.0
  %609 = vmatprep.subr.mxu0 0.0
  %610 = vmatpush2.msra.mxu0 0.0
  %611 = vmatprep.subr.mxu0 0.0
  %612 = vmatpush2.msra.mxu0 0.0
  %613 = vmatprep.subr.mxu0 0.0
  %614 = vmatpush2.msra.mxu0 0.0
  %615 = vmatprep.subr.mxu0 0.0
  %616 = vmatpush2.msra.mxu0 0.0
  %617 = vmatprep.subr.mxu0 0.0
  %618 = vmatpush2.msra.mxu0 0.0
  %619 = vmatprep.subr.mxu0 0.0
  %620 = vmatpush2.msra.mxu0 0.0
  %621 = vmatprep.subr.mxu0 0.0
  %622 = vmatpush2.msra.mxu0 0.0
  %623 = vmatprep.subr.mxu0 0.0
  %624 = vmatpush2.msra.mxu0 0.0
  %625 = vmatprep.subr.mxu0 0.0
  %626 = vmatpush2.msra.mxu0 0.0
  %627 = vmatprep.subr.mxu0 0.0
  %628 = vmatpush2.msra.mxu0 0.0
  %629 = vmatprep.subr.mxu0 0.0
  %630 = vmatpush2.msra.mxu0 0.0
  %631 = vmatprep.subr.mxu0 0.0
  %632 = vmatpush2.msra.mxu0 0.0
  %633 = vmatprep.subr.mxu0 0.0
  %634 = vmatpush2.msra.mxu0 0.0
  %635 = vmatprep.mubr.f32.mxu0 0.0
  %636 = vmatmul.mubr.f32.gmra.mxu0 %v557
  %v637 = vpop.f32.mrf.mxu0
  %v638 = vadd.f32 0.0, %v637
  %v639 = vpop.f32.mrf.mxu0
  %v640 = vadd.f32 0.0, %v639
  %641 = vdwg.mxu0
  %642 = vmatprep.subr.mxu0 0.0
  %643 = vmatpush1.msra.mxu0 0.0
  %644 = vmatprep.subr.mxu0 0.0
  %645 = vmatpush1.msra.mxu0 0.0
  %646 = vmatprep.subr.mxu0 0.0
  %647 = vmatpush1.msra.mxu0 0.0
  %648 = vmatprep.subr.mxu0 0.0
  %649 = vmatpush1.msra.mxu0 0.0
  %650 = vmatprep.subr.mxu0 0.0
  %651 = vmatpush1.msra.mxu0 0.0
  %652 = vmatprep.subr.mxu0 0.0
  %653 = vmatpush1.msra.mxu0 0.0
  %654 = vmatprep.subr.mxu0 0.0
  %655 = vmatpush1.msra.mxu0 0.0
  %656 = vmatprep.subr.mxu0 0.0
  %657 = vmatpush1.msra.mxu0 0.0
  %658 = vmatprep.subr.mxu0 0.0
  %659 = vmatpush1.msra.mxu0 0.0
  %660 = vmatprep.subr.mxu0 0.0
  %661 = vmatpush1.msra.mxu0 0.0
  %662 = vmatprep.subr.mxu0 0.0
  %663 = vmatpush1.msra.mxu0 0.0
  %664 = vmatprep.subr.mxu0 0.0
  %665 = vmatpush1.msra.mxu0 0.0
  %666 = vmatprep.subr.mxu0 0.0
  %667 = vmatpush1.msra.mxu0 0.0
  %668 = vmatprep.subr.mxu0 0.0
  %669 = vmatpush1.msra.mxu0 0.0
  %670 = vmatprep.subr.mxu0 0.0
  %671 = vmatpush1.msra.mxu0 0.0
  %672 = vmatprep.subr.mxu0 %v565
  %673 = vmatpush1.msra.mxu0 %v563
  %674 = vmatprep.subr.mxu0 0.0
  %675 = vmatpush2.msra.mxu0 0.0
  %676 = vmatprep.subr.mxu0 0.0
  %677 = vmatpush2.msra.mxu0 0.0
  %678 = vmatprep.subr.mxu0 0.0
  %679 = vmatpush2.msra.mxu0 0.0
  %680 = vmatprep.subr.mxu0 0.0
  %681 = vmatpush2.msra.mxu0 0.0
  %682 = vmatprep.subr.mxu0 0.0
  %683 = vmatpush2.msra.mxu0 0.0
  %684 = vmatprep.subr.mxu0 0.0
  %685 = vmatpush2.msra.mxu0 0.0
  %686 = vmatprep.subr.mxu0 0.0
  %687 = vmatpush2.msra.mxu0 0.0
  %688 = vmatprep.subr.mxu0 0.0
  %689 = vmatpush2.msra.mxu0 0.0
  %690 = vmatprep.subr.mxu0 0.0
  %691 = vmatpush2.msra.mxu0 0.0
  %692 = vmatprep.subr.mxu0 0.0
  %693 = vmatpush2.msra.mxu0 0.0
  %694 = vmatprep.subr.mxu0 0.0
  %695 = vmatpush2.msra.mxu0 0.0
  %696 = vmatprep.subr.mxu0 0.0
  %697 = vmatpush2.msra.mxu0 0.0
  %698 = vmatprep.subr.mxu0 0.0
  %699 = vmatpush2.msra.mxu0 0.0
  %700 = vmatprep.subr.mxu0 0.0
  %701 = vmatpush2.msra.mxu0 0.0
  %702 = vmatprep.subr.mxu0 0.0
  %703 = vmatpush2.msra.mxu0 0.0
  %704 = vmatprep.subr.mxu0 0.0
  %705 = vmatpush2.msra.mxu0 0.0
  %706 = vmatprep.mubr.f32.mxu0 0.0
  %707 = vmatmul.mubr.f32.gmra.mxu0 %v557
  %v708 = vpop.f32.mrf.mxu0
  %v709 = vadd.f32 0.0, %v708
  %v710 = vpop.f32.mrf.mxu0
  %v711 = vadd.f32 0.0, %v710
  %712 = vdwg.mxu0
  %713 = vmatprep.subr.mxu0 0.0
  %714 = vmatpush1.msra.mxu0 0.0
  %715 = vmatprep.subr.mxu0 0.0
  %716 = vmatpush1.msra.mxu0 0.0
  %717 = vmatprep.subr.mxu0 0.0
  %718 = vmatpush1.msra.mxu0 0.0
  %719 = vmatprep.subr.mxu0 0.0
  %720 = vmatpush1.msra.mxu0 0.0
  %721 = vmatprep.subr.mxu0 0.0
  %722 = vmatpush1.msra.mxu0 0.0
  %723 = vmatprep.subr.mxu0 0.0
  %724 = vmatpush1.msra.mxu0 0.0
  %725 = vmatprep.subr.mxu0 0.0
  %726 = vmatpush1.msra.mxu0 0.0
  %727 = vmatprep.subr.mxu0 0.0
  %728 = vmatpush1.msra.mxu0 0.0
  %729 = vmatprep.subr.mxu0 0.0
  %730 = vmatpush1.msra.mxu0 0.0
  %731 = vmatprep.subr.mxu0 0.0
  %732 = vmatpush1.msra.mxu0 0.0
  %733 = vmatprep.subr.mxu0 0.0
  %734 = vmatpush1.msra.mxu0 0.0
  %735 = vmatprep.subr.mxu0 0.0
  %736 = vmatpush1.msra.mxu0 0.0
  %737 = vmatprep.subr.mxu0 0.0
  %738 = vmatpush1.msra.mxu0 0.0
  %739 = vmatprep.subr.mxu0 0.0
  %740 = vmatpush1.msra.mxu0 0.0
  %741 = vmatprep.subr.mxu0 0.0
  %742 = vmatpush1.msra.mxu0 0.0
  %743 = vmatprep.subr.mxu0 %v569
  %744 = vmatpush1.msra.mxu0 %v567
  %745 = vmatprep.subr.mxu0 0.0
  %746 = vmatpush2.msra.mxu0 0.0
  %747 = vmatprep.subr.mxu0 0.0
  %748 = vmatpush2.msra.mxu0 0.0
  %749 = vmatprep.subr.mxu0 0.0
  %750 = vmatpush2.msra.mxu0 0.0
  %751 = vmatprep.subr.mxu0 0.0
  %752 = vmatpush2.msra.mxu0 0.0
  %753 = vmatprep.subr.mxu0 0.0
  %754 = vmatpush2.msra.mxu0 0.0
  %755 = vmatprep.subr.mxu0 0.0
  %756 = vmatpush2.msra.mxu0 0.0
  %757 = vmatprep.subr.mxu0 0.0
  %758 = vmatpush2.msra.mxu0 0.0
  %759 = vmatprep.subr.mxu0 0.0
  %760 = vmatpush2.msra.mxu0 0.0
  %761 = vmatprep.subr.mxu0 0.0
  %762 = vmatpush2.msra.mxu0 0.0
  %763 = vmatprep.subr.mxu0 0.0
  %764 = vmatpush2.msra.mxu0 0.0
  %765 = vmatprep.subr.mxu0 0.0
  %766 = vmatpush2.msra.mxu0 0.0
  %767 = vmatprep.subr.mxu0 0.0
  %768 = vmatpush2.msra.mxu0 0.0
  %769 = vmatprep.subr.mxu0 0.0
  %770 = vmatpush2.msra.mxu0 0.0
  %771 = vmatprep.subr.mxu0 0.0
  %772 = vmatpush2.msra.mxu0 0.0
  %773 = vmatprep.subr.mxu0 0.0
  %774 = vmatpush2.msra.mxu0 0.0
  %775 = vmatprep.subr.mxu0 0.0
  %776 = vmatpush2.msra.mxu0 0.0
  %777 = vmatprep.mubr.f32.mxu0 0.0
  %778 = vmatmul.mubr.f32.gmra.mxu0 %v557
  %v779 = vpop.f32.mrf.mxu0
  %v780 = vadd.f32 0.0, %v779
  %v781 = vpop.f32.mrf.mxu0
  %v782 = vadd.f32 0.0, %v781
  %783 = vdwg.mxu0
  %v784 = vadd.f32 %v376, %v638
  %v785 = vadd.f32 %v378, %v640
  %v786 = vadd.f32 %v447, %v709
  %v787 = vadd.f32 %v449, %v711
  %v788 = vadd.f32 %v518, %v780
  %v789 = vadd.f32 %v520, %v782
  %v790 = vld [vmem:[%s0] sm:$0xff]
  %v791 = vld [vmem:[%s0 + $0x8] sm:$0xff]
  %v792 = vld [vmem:[%s0 + $0x10] sm:$0xff]
  %v793 = vld [vmem:[%s0 + $0x18] sm:$0xf]
  %s794 = scalar_lea.vmem %s1, 24
  %v795 = vld [vmem:[%s794] sm:$0xff]
  %v800 = vcombine.high %v790, %v790
  %v801 = vcombine.high %v791, %v791
  %v802 = vcombine.high %v792, %v792
  %803 = vrot.lane.b32.xlu0 %v790, 110
  %v804 = vpop.permute.xlu0 %803
  %805 = vrot.lane.b32.xlu0 %v800, 110
  %v806 = vpop.permute.xlu0 %805
  %807 = vrot.lane.b32.xlu0 %v791, 110
  %v808 = vpop.permute.xlu0 %807
  %809 = vrot.lane.b32.xlu0 %v801, 110
  %v810 = vpop.permute.xlu0 %809
  %811 = vrot.lane.b32.xlu0 %v792, 110
  %v812 = vpop.permute.xlu0 %811
  %813 = vrot.lane.b32.xlu0 %v802, 110
  %v814 = vpop.permute.xlu0 %813
  %815 = vrot.lane.b32.xlu0 %v793, 110
  %v816 = vpop.permute.xlu0 %815
  %vm817 = vcmask 900096
  %v818 = vsel %vm817, %v804, %v806
  %v819 = vsel %vm817, %v806, %v808
  %v820 = vsel %vm817, %v808, %v810
  %v821 = vsel %vm817, %v810, %v812
  %v822 = vsel %vm817, %v812, %v814
  %v823 = vsel %vm817, %v814, %v816
  %v825 = vsel %vm58, %v795, 0
  %v827 = vsel %vm62, %v818, 0
  %v829 = vsel %vm62, %v819, 0
  %v831 = vsel %vm62, %v820, 0
  %v833 = vsel %vm62, %v821, 0
  %v835 = vsel %vm62, %v822, 0
  %v837 = vsel %vm62, %v823, 0
  %839 = vmatprep.subr.mxu0 0.0
  %840 = vmatpush1.msra.mxu0 0.0
  %841 = vmatprep.subr.mxu0 0.0
  %842 = vmatpush1.msra.mxu0 0.0
  %843 = vmatprep.subr.mxu0 0.0
  %844 = vmatpush1.msra.mxu0 0.0
  %845 = vmatprep.subr.mxu0 0.0
  %846 = vmatpush1.msra.mxu0 0.0
  %847 = vmatprep.subr.mxu0 0.0
  %848 = vmatpush1.msra.mxu0 0.0
  %849 = vmatprep.subr.mxu0 0.0
  %850 = vmatpush1.msra.mxu0 0.0
  %851 = vmatprep.subr.mxu0 0.0
  %852 = vmatpush1.msra.mxu0 0.0
  %853 = vmatprep.subr.mxu0 0.0
  %854 = vmatpush1.msra.mxu0 0.0
  %855 = vmatprep.subr.mxu0 0.0
  %856 = vmatpush1.msra.mxu0 0.0
  %857 = vmatprep.subr.mxu0 0.0
  %858 = vmatpush1.msra.mxu0 0.0
  %859 = vmatprep.subr.mxu0 0.0
  %860 = vmatpush1.msra.mxu0 0.0
  %861 = vmatprep.subr.mxu0 0.0
  %862 = vmatpush1.msra.mxu0 0.0
  %863 = vmatprep.subr.mxu0 0.0
  %864 = vmatpush1.msra.mxu0 0.0
  %865 = vmatprep.subr.mxu0 0.0
  %866 = vmatpush1.msra.mxu0 0.0
  %867 = vmatprep.subr.mxu0 0.0
  %868 = vmatpush1.msra.mxu0 0.0
  %869 = vmatprep.subr.mxu0 %v829
  %870 = vmatpush1.msra.mxu0 %v827
  %871 = vmatprep.subr.mxu0 0.0
  %872 = vmatpush2.msra.mxu0 0.0
  %873 = vmatprep.subr.mxu0 0.0
  %874 = vmatpush2.msra.mxu0 0.0
  %875 = vmatprep.subr.mxu0 0.0
  %876 = vmatpush2.msra.mxu0 0.0
  %877 = vmatprep.subr.mxu0 0.0
  %878 = vmatpush2.msra.mxu0 0.0
  %879 = vmatprep.subr.mxu0 0.0
  %880 = vmatpush2.msra.mxu0 0.0
  %881 = vmatprep.subr.mxu0 0.0
  %882 = vmatpush2.msra.mxu0 0.0
  %883 = vmatprep.subr.mxu0 0.0
  %884 = vmatpush2.msra.mxu0 0.0
  %885 = vmatprep.subr.mxu0 0.0
  %886 = vmatpush2.msra.mxu0 0.0
  %887 = vmatprep.subr.mxu0 0.0
  %888 = vmatpush2.msra.mxu0 0.0
  %889 = vmatprep.subr.mxu0 0.0
  %890 = vmatpush2.msra.mxu0 0.0
  %891 = vmatprep.subr.mxu0 0.0
  %892 = vmatpush2.msra.mxu0 0.0
  %893 = vmatprep.subr.mxu0 0.0
  %894 = vmatpush2.msra.mxu0 0.0
  %895 = vmatprep.subr.mxu0 0.0
  %896 = vmatpush2.msra.mxu0 0.0
  %897 = vmatprep.subr.mxu0 0.0
  %898 = vmatpush2.msra.mxu0 0.0
  %899 = vmatprep.subr.mxu0 0.0
  %900 = vmatpush2.msra.mxu0 0.0
  %901 = vmatprep.subr.mxu0 0.0
  %902 = vmatpush2.msra.mxu0 0.0
  %903 = vmatprep.mubr.f32.mxu0 0.0
  %904 = vmatmul.mubr.f32.gmra.mxu0 %v825
  %v905 = vpop.f32.mrf.mxu0
  %v906 = vadd.f32 0.0, %v905
  %v907 = vpop.f32.mrf.mxu0
  %v908 = vadd.f32 0.0, %v907
  %909 = vdwg.mxu0
  %910 = vmatprep.subr.mxu0 0.0
  %911 = vmatpush1.msra.mxu0 0.0
  %912 = vmatprep.subr.mxu0 0.0
  %913 = vmatpush1.msra.mxu0 0.0
  %914 = vmatprep.subr.mxu0 0.0
  %915 = vmatpush1.msra.mxu0 0.0
  %916 = vmatprep.subr.mxu0 0.0
  %917 = vmatpush1.msra.mxu0 0.0
  %918 = vmatprep.subr.mxu0 0.0
  %919 = vmatpush1.msra.mxu0 0.0
  %920 = vmatprep.subr.mxu0 0.0
  %921 = vmatpush1.msra.mxu0 0.0
  %922 = vmatprep.subr.mxu0 0.0
  %923 = vmatpush1.msra.mxu0 0.0
  %924 = vmatprep.subr.mxu0 0.0
  %925 = vmatpush1.msra.mxu0 0.0
  %926 = vmatprep.subr.mxu0 0.0
  %927 = vmatpush1.msra.mxu0 0.0
  %928 = vmatprep.subr.mxu0 0.0
  %929 = vmatpush1.msra.mxu0 0.0
  %930 = vmatprep.subr.mxu0 0.0
  %931 = vmatpush1.msra.mxu0 0.0
  %932 = vmatprep.subr.mxu0 0.0
  %933 = vmatpush1.msra.mxu0 0.0
  %934 = vmatprep.subr.mxu0 0.0
  %935 = vmatpush1.msra.mxu0 0.0
  %936 = vmatprep.subr.mxu0 0.0
  %937 = vmatpush1.msra.mxu0 0.0
  %938 = vmatprep.subr.mxu0 0.0
  %939 = vmatpush1.msra.mxu0 0.0
  %940 = vmatprep.subr.mxu0 %v833
  %941 = vmatpush1.msra.mxu0 %v831
  %942 = vmatprep.subr.mxu0 0.0
  %943 = vmatpush2.msra.mxu0 0.0
  %944 = vmatprep.subr.mxu0 0.0
  %945 = vmatpush2.msra.mxu0 0.0
  %946 = vmatprep.subr.mxu0 0.0
  %947 = vmatpush2.msra.mxu0 0.0
  %948 = vmatprep.subr.mxu0 0.0
  %949 = vmatpush2.msra.mxu0 0.0
  %950 = vmatprep.subr.mxu0 0.0
  %951 = vmatpush2.msra.mxu0 0.0
  %952 = vmatprep.subr.mxu0 0.0
  %953 = vmatpush2.msra.mxu0 0.0
  %954 = vmatprep.subr.mxu0 0.0
  %955 = vmatpush2.msra.mxu0 0.0
  %956 = vmatprep.subr.mxu0 0.0
  %957 = vmatpush2.msra.mxu0 0.0
  %958 = vmatprep.subr.mxu0 0.0
  %959 = vmatpush2.msra.mxu0 0.0
  %960 = vmatprep.subr.mxu0 0.0
  %961 = vmatpush2.msra.mxu0 0.0
  %962 = vmatprep.subr.mxu0 0.0
  %963 = vmatpush2.msra.mxu0 0.0
  %964 = vmatprep.subr.mxu0 0.0
  %965 = vmatpush2.msra.mxu0 0.0
  %966 = vmatprep.subr.mxu0 0.0
  %967 = vmatpush2.msra.mxu0 0.0
  %968 = vmatprep.subr.mxu0 0.0
  %969 = vmatpush2.msra.mxu0 0.0
  %970 = vmatprep.subr.mxu0 0.0
  %971 = vmatpush2.msra.mxu0 0.0
  %972 = vmatprep.subr.mxu0 0.0
  %973 = vmatpush2.msra.mxu0 0.0
  %974 = vmatprep.mubr.f32.mxu0 0.0
  %975 = vmatmul.mubr.f32.gmra.mxu0 %v825
  %v976 = vpop.f32.mrf.mxu0
  %v977 = vadd.f32 0.0, %v976
  %v978 = vpop.f32.mrf.mxu0
  %v979 = vadd.f32 0.0, %v978
  %980 = vdwg.mxu0
  %981 = vmatprep.subr.mxu0 0.0
  %982 = vmatpush1.msra.mxu0 0.0
  %983 = vmatprep.subr.mxu0 0.0
  %984 = vmatpush1.msra.mxu0 0.0
  %985 = vmatprep.subr.mxu0 0.0
  %986 = vmatpush1.msra.mxu0 0.0
  %987 = vmatprep.subr.mxu0 0.0
  %988 = vmatpush1.msra.mxu0 0.0
  %989 = vmatprep.subr.mxu0 0.0
  %990 = vmatpush1.msra.mxu0 0.0
  %991 = vmatprep.subr.mxu0 0.0
  %992 = vmatpush1.msra.mxu0 0.0
  %993 = vmatprep.subr.mxu0 0.0
  %994 = vmatpush1.msra.mxu0 0.0
  %995 = vmatprep.subr.mxu0 0.0
  %996 = vmatpush1.msra.mxu0 0.0
  %997 = vmatprep.subr.mxu0 0.0
  %998 = vmatpush1.msra.mxu0 0.0
  %999 = vmatprep.subr.mxu0 0.0
  %1000 = vmatpush1.msra.mxu0 0.0
  %1001 = vmatprep.subr.mxu0 0.0
  %1002 = vmatpush1.msra.mxu0 0.0
  %1003 = vmatprep.subr.mxu0 0.0
  %1004 = vmatpush1.msra.mxu0 0.0
  %1005 = vmatprep.subr.mxu0 0.0
  %1006 = vmatpush1.msra.mxu0 0.0
  %1007 = vmatprep.subr.mxu0 0.0
  %1008 = vmatpush1.msra.mxu0 0.0
  %1009 = vmatprep.subr.mxu0 0.0
  %1010 = vmatpush1.msra.mxu0 0.0
  %1011 = vmatprep.subr.mxu0 %v837
  %1012 = vmatpush1.msra.mxu0 %v835
  %1013 = vmatprep.subr.mxu0 0.0
  %1014 = vmatpush2.msra.mxu0 0.0
  %1015 = vmatprep.subr.mxu0 0.0
  %1016 = vmatpush2.msra.mxu0 0.0
  %1017 = vmatprep.subr.mxu0 0.0
  %1018 = vmatpush2.msra.mxu0 0.0
  %1019 = vmatprep.subr.mxu0 0.0
  %1020 = vmatpush2.msra.mxu0 0.0
  %1021 = vmatprep.subr.mxu0 0.0
  %1022 = vmatpush2.msra.mxu0 0.0
  %1023 = vmatprep.subr.mxu0 0.0
  %1024 = vmatpush2.msra.mxu0 0.0
  %1025 = vmatprep.subr.mxu0 0.0
  %1026 = vmatpush2.msra.mxu0 0.0
  %1027 = vmatprep.subr.mxu0 0.0
  %1028 = vmatpush2.msra.mxu0 0.0
  %1029 = vmatprep.subr.mxu0 0.0
  %1030 = vmatpush2.msra.mxu0 0.0
  %1031 = vmatprep.subr.mxu0 0.0
  %1032 = vmatpush2.msra.mxu0 0.0
  %1033 = vmatprep.subr.mxu0 0.0
  %1034 = vmatpush2.msra.mxu0 0.0
  %1035 = vmatprep.subr.mxu0 0.0
  %1036 = vmatpush2.msra.mxu0 0.0
  %1037 = vmatprep.subr.mxu0 0.0
  %1038 = vmatpush2.msra.mxu0 0.0
  %1039 = vmatprep.subr.mxu0 0.0
  %1040 = vmatpush2.msra.mxu0 0.0
  %1041 = vmatprep.subr.mxu0 0.0
  %1042 = vmatpush2.msra.mxu0 0.0
  %1043 = vmatprep.subr.mxu0 0.0
  %1044 = vmatpush2.msra.mxu0 0.0
  %1045 = vmatprep.mubr.f32.mxu0 0.0
  %1046 = vmatmul.mubr.f32.gmra.mxu0 %v825
  %v1047 = vpop.f32.mrf.mxu0
  %v1048 = vadd.f32 0.0, %v1047
  %v1049 = vpop.f32.mrf.mxu0
  %v1050 = vadd.f32 0.0, %v1049
  %1051 = vdwg.mxu0
  %v1052 = vadd.f32 %v784, %v906
  %v1053 = vadd.f32 %v785, %v908
  %v1054 = vadd.f32 %v786, %v977
  %v1055 = vadd.f32 %v787, %v979
  %v1056 = vadd.f32 %v788, %v1048
  %v1057 = vadd.f32 %v789, %v1050
  %v1058 = vld [vmem:[%s0] sm:$0xff]
  %v1059 = vld [vmem:[%s0 + $0x8] sm:$0xff]
  %v1060 = vld [vmem:[%s0 + $0x10] sm:$0xff]
  %v1061 = vld [vmem:[%s0 + $0x18] sm:$0xf]
  %s1062 = scalar_lea.vmem %s1, 32
  %v1063 = vld [vmem:[%s1062] sm:$0xff]
  %v1068 = vcombine.high %v1058, %v1058
  %v1069 = vcombine.high %v1059, %v1059
  %v1070 = vcombine.high %v1060, %v1060
  %1071 = vrot.lane.b32.xlu0 %v1058, 109
  %v1072 = vpop.permute.xlu0 %1071
  %1073 = vrot.lane.b32.xlu0 %v1068, 109
  %v1074 = vpop.permute.xlu0 %1073
  %1075 = vrot.lane.b32.xlu0 %v1059, 109
  %v1076 = vpop.permute.xlu0 %1075
  %1077 = vrot.lane.b32.xlu0 %v1069, 109
  %v1078 = vpop.permute.xlu0 %1077
  %1079 = vrot.lane.b32.xlu0 %v1060, 109
  %v1080 = vpop.permute.xlu0 %1079
  %1081 = vrot.lane.b32.xlu0 %v1070, 109
  %v1082 = vpop.permute.xlu0 %1081
  %1083 = vrot.lane.b32.xlu0 %v1061, 109
  %v1084 = vpop.permute.xlu0 %1083
  %vm1085 = vcmask 891904
  %v1086 = vsel %vm1085, %v1072, %v1074
  %v1087 = vsel %vm1085, %v1074, %v1076
  %v1088 = vsel %vm1085, %v1076, %v1078
  %v1089 = vsel %vm1085, %v1078, %v1080
  %v1090 = vsel %vm1085, %v1080, %v1082
  %v1091 = vsel %vm1085, %v1082, %v1084
  %v1093 = vsel %vm58, %v1063, 0
  %v1095 = vsel %vm62, %v1086, 0
  %v1097 = vsel %vm62, %v1087, 0
  %v1099 = vsel %vm62, %v1088, 0
  %v1101 = vsel %vm62, %v1089, 0
  %v1103 = vsel %vm62, %v1090, 0
  %v1105 = vsel %vm62, %v1091, 0
  %1107 = vmatprep.subr.mxu0 0.0
  %1108 = vmatpush1.msra.mxu0 0.0
  %1109 = vmatprep.subr.mxu0 0.0
  %1110 = vmatpush1.msra.mxu0 0.0
  %1111 = vmatprep.subr.mxu0 0.0
  %1112 = vmatpush1.msra.mxu0 0.0
  %1113 = vmatprep.subr.mxu0 0.0
  %1114 = vmatpush1.msra.mxu0 0.0
  %1115 = vmatprep.subr.mxu0 0.0
  %1116 = vmatpush1.msra.mxu0 0.0
  %1117 = vmatprep.subr.mxu0 0.0
  %1118 = vmatpush1.msra.mxu0 0.0
  %1119 = vmatprep.subr.mxu0 0.0
  %1120 = vmatpush1.msra.mxu0 0.0
  %1121 = vmatprep.subr.mxu0 0.0
  %1122 = vmatpush1.msra.mxu0 0.0
  %1123 = vmatprep.subr.mxu0 0.0
  %1124 = vmatpush1.msra.mxu0 0.0
  %1125 = vmatprep.subr.mxu0 0.0
  %1126 = vmatpush1.msra.mxu0 0.0
  %1127 = vmatprep.subr.mxu0 0.0
  %1128 = vmatpush1.msra.mxu0 0.0
  %1129 = vmatprep.subr.mxu0 0.0
  %1130 = vmatpush1.msra.mxu0 0.0
  %1131 = vmatprep.subr.mxu0 0.0
  %1132 = vmatpush1.msra.mxu0 0.0
  %1133 = vmatprep.subr.mxu0 0.0
  %1134 = vmatpush1.msra.mxu0 0.0
  %1135 = vmatprep.subr.mxu0 0.0
  %1136 = vmatpush1.msra.mxu0 0.0
  %1137 = vmatprep.subr.mxu0 %v1097
  %1138 = vmatpush1.msra.mxu0 %v1095
  %1139 = vmatprep.subr.mxu0 0.0
  %1140 = vmatpush2.msra.mxu0 0.0
  %1141 = vmatprep.subr.mxu0 0.0
  %1142 = vmatpush2.msra.mxu0 0.0
  %1143 = vmatprep.subr.mxu0 0.0
  %1144 = vmatpush2.msra.mxu0 0.0
  %1145 = vmatprep.subr.mxu0 0.0
  %1146 = vmatpush2.msra.mxu0 0.0
  %1147 = vmatprep.subr.mxu0 0.0
  %1148 = vmatpush2.msra.mxu0 0.0
  %1149 = vmatprep.subr.mxu0 0.0
  %1150 = vmatpush2.msra.mxu0 0.0
  %1151 = vmatprep.subr.mxu0 0.0
  %1152 = vmatpush2.msra.mxu0 0.0
  %1153 = vmatprep.subr.mxu0 0.0
  %1154 = vmatpush2.msra.mxu0 0.0
  %1155 = vmatprep.subr.mxu0 0.0
  %1156 = vmatpush2.msra.mxu0 0.0
  %1157 = vmatprep.subr.mxu0 0.0
  %1158 = vmatpush2.msra.mxu0 0.0
  %1159 = vmatprep.subr.mxu0 0.0
  %1160 = vmatpush2.msra.mxu0 0.0
  %1161 = vmatprep.subr.mxu0 0.0
  %1162 = vmatpush2.msra.mxu0 0.0
  %1163 = vmatprep.subr.mxu0 0.0
  %1164 = vmatpush2.msra.mxu0 0.0
  %1165 = vmatprep.subr.mxu0 0.0
  %1166 = vmatpush2.msra.mxu0 0.0
  %1167 = vmatprep.subr.mxu0 0.0
  %1168 = vmatpush2.msra.mxu0 0.0
  %1169 = vmatprep.subr.mxu0 0.0
  %1170 = vmatpush2.msra.mxu0 0.0
  %1171 = vmatprep.mubr.f32.mxu0 0.0
  %1172 = vmatmul.mubr.f32.gmra.mxu0 %v1093
  %v1173 = vpop.f32.mrf.mxu0
  %v1174 = vadd.f32 0.0, %v1173
  %v1175 = vpop.f32.mrf.mxu0
  %v1176 = vadd.f32 0.0, %v1175
  %1177 = vdwg.mxu0
  %1178 = vmatprep.subr.mxu0 0.0
  %1179 = vmatpush1.msra.mxu0 0.0
  %1180 = vmatprep.subr.mxu0 0.0
  %1181 = vmatpush1.msra.mxu0 0.0
  %1182 = vmatprep.subr.mxu0 0.0
  %1183 = vmatpush1.msra.mxu0 0.0
  %1184 = vmatprep.subr.mxu0 0.0
  %1185 = vmatpush1.msra.mxu0 0.0
  %1186 = vmatprep.subr.mxu0 0.0
  %1187 = vmatpush1.msra.mxu0 0.0
  %1188 = vmatprep.subr.mxu0 0.0
  %1189 = vmatpush1.msra.mxu0 0.0
  %1190 = vmatprep.subr.mxu0 0.0
  %1191 = vmatpush1.msra.mxu0 0.0
  %1192 = vmatprep.subr.mxu0 0.0
  %1193 = vmatpush1.msra.mxu0 0.0
  %1194 = vmatprep.subr.mxu0 0.0
  %1195 = vmatpush1.msra.mxu0 0.0
  %1196 = vmatprep.subr.mxu0 0.0
  %1197 = vmatpush1.msra.mxu0 0.0
  %1198 = vmatprep.subr.mxu0 0.0
  %1199 = vmatpush1.msra.mxu0 0.0
  %1200 = vmatprep.subr.mxu0 0.0
  %1201 = vmatpush1.msra.mxu0 0.0
  %1202 = vmatprep.subr.mxu0 0.0
  %1203 = vmatpush1.msra.mxu0 0.0
  %1204 = vmatprep.subr.mxu0 0.0
  %1205 = vmatpush1.msra.mxu0 0.0
  %1206 = vmatprep.subr.mxu0 0.0
  %1207 = vmatpush1.msra.mxu0 0.0
  %1208 = vmatprep.subr.mxu0 %v1101
  %1209 = vmatpush1.msra.mxu0 %v1099
  %1210 = vmatprep.subr.mxu0 0.0
  %1211 = vmatpush2.msra.mxu0 0.0
  %1212 = vmatprep.subr.mxu0 0.0
  %1213 = vmatpush2.msra.mxu0 0.0
  %1214 = vmatprep.subr.mxu0 0.0
  %1215 = vmatpush2.msra.mxu0 0.0
  %1216 = vmatprep.subr.mxu0 0.0
  %1217 = vmatpush2.msra.mxu0 0.0
  %1218 = vmatprep.subr.mxu0 0.0
  %1219 = vmatpush2.msra.mxu0 0.0
  %1220 = vmatprep.subr.mxu0 0.0
  %1221 = vmatpush2.msra.mxu0 0.0
  %1222 = vmatprep.subr.mxu0 0.0
  %1223 = vmatpush2.msra.mxu0 0.0
  %1224 = vmatprep.subr.mxu0 0.0
  %1225 = vmatpush2.msra.mxu0 0.0
  %1226 = vmatprep.subr.mxu0 0.0
  %1227 = vmatpush2.msra.mxu0 0.0
  %1228 = vmatprep.subr.mxu0 0.0
  %1229 = vmatpush2.msra.mxu0 0.0
  %1230 = vmatprep.subr.mxu0 0.0
  %1231 = vmatpush2.msra.mxu0 0.0
  %1232 = vmatprep.subr.mxu0 0.0
  %1233 = vmatpush2.msra.mxu0 0.0
  %1234 = vmatprep.subr.mxu0 0.0
  %1235 = vmatpush2.msra.mxu0 0.0
  %1236 = vmatprep.subr.mxu0 0.0
  %1237 = vmatpush2.msra.mxu0 0.0
  %1238 = vmatprep.subr.mxu0 0.0
  %1239 = vmatpush2.msra.mxu0 0.0
  %1240 = vmatprep.subr.mxu0 0.0
  %1241 = vmatpush2.msra.mxu0 0.0
  %1242 = vmatprep.mubr.f32.mxu0 0.0
  %1243 = vmatmul.mubr.f32.gmra.mxu0 %v1093
  %v1244 = vpop.f32.mrf.mxu0
  %v1245 = vadd.f32 0.0, %v1244
  %v1246 = vpop.f32.mrf.mxu0
  %v1247 = vadd.f32 0.0, %v1246
  %1248 = vdwg.mxu0
  %1249 = vmatprep.subr.mxu0 0.0
  %1250 = vmatpush1.msra.mxu0 0.0
  %1251 = vmatprep.subr.mxu0 0.0
  %1252 = vmatpush1.msra.mxu0 0.0
  %1253 = vmatprep.subr.mxu0 0.0
  %1254 = vmatpush1.msra.mxu0 0.0
  %1255 = vmatprep.subr.mxu0 0.0
  %1256 = vmatpush1.msra.mxu0 0.0
  %1257 = vmatprep.subr.mxu0 0.0
  %1258 = vmatpush1.msra.mxu0 0.0
  %1259 = vmatprep.subr.mxu0 0.0
  %1260 = vmatpush1.msra.mxu0 0.0
  %1261 = vmatprep.subr.mxu0 0.0
  %1262 = vmatpush1.msra.mxu0 0.0
  %1263 = vmatprep.subr.mxu0 0.0
  %1264 = vmatpush1.msra.mxu0 0.0
  %1265 = vmatprep.subr.mxu0 0.0
  %1266 = vmatpush1.msra.mxu0 0.0
  %1267 = vmatprep.subr.mxu0 0.0
  %1268 = vmatpush1.msra.mxu0 0.0
  %1269 = vmatprep.subr.mxu0 0.0
  %1270 = vmatpush1.msra.mxu0 0.0
  %1271 = vmatprep.subr.mxu0 0.0
  %1272 = vmatpush1.msra.mxu0 0.0
  %1273 = vmatprep.subr.mxu0 0.0
  %1274 = vmatpush1.msra.mxu0 0.0
  %1275 = vmatprep.subr.mxu0 0.0
  %1276 = vmatpush1.msra.mxu0 0.0
  %1277 = vmatprep.subr.mxu0 0.0
  %1278 = vmatpush1.msra.mxu0 0.0
  %1279 = vmatprep.subr.mxu0 %v1105
  %1280 = vmatpush1.msra.mxu0 %v1103
  %1281 = vmatprep.subr.mxu0 0.0
  %1282 = vmatpush2.msra.mxu0 0.0
  %1283 = vmatprep.subr.mxu0 0.0
  %1284 = vmatpush2.msra.mxu0 0.0
  %1285 = vmatprep.subr.mxu0 0.0
  %1286 = vmatpush2.msra.mxu0 0.0
  %1287 = vmatprep.subr.mxu0 0.0
  %1288 = vmatpush2.msra.mxu0 0.0
  %1289 = vmatprep.subr.mxu0 0.0
  %1290 = vmatpush2.msra.mxu0 0.0
  %1291 = vmatprep.subr.mxu0 0.0
  %1292 = vmatpush2.msra.mxu0 0.0
  %1293 = vmatprep.subr.mxu0 0.0
  %1294 = vmatpush2.msra.mxu0 0.0
  %1295 = vmatprep.subr.mxu0 0.0
  %1296 = vmatpush2.msra.mxu0 0.0
  %1297 = vmatprep.subr.mxu0 0.0
  %1298 = vmatpush2.msra.mxu0 0.0
  %1299 = vmatprep.subr.mxu0 0.0
  %1300 = vmatpush2.msra.mxu0 0.0
  %1301 = vmatprep.subr.mxu0 0.0
  %1302 = vmatpush2.msra.mxu0 0.0
  %1303 = vmatprep.subr.mxu0 0.0
  %1304 = vmatpush2.msra.mxu0 0.0
  %1305 = vmatprep.subr.mxu0 0.0
  %1306 = vmatpush2.msra.mxu0 0.0
  %1307 = vmatprep.subr.mxu0 0.0
  %1308 = vmatpush2.msra.mxu0 0.0
  %1309 = vmatprep.subr.mxu0 0.0
  %1310 = vmatpush2.msra.mxu0 0.0
  %1311 = vmatprep.subr.mxu0 0.0
  %1312 = vmatpush2.msra.mxu0 0.0
  %1313 = vmatprep.mubr.f32.mxu0 0.0
  %1314 = vmatmul.mubr.f32.gmra.mxu0 %v1093
  %v1315 = vpop.f32.mrf.mxu0
  %v1316 = vadd.f32 0.0, %v1315
  %v1317 = vpop.f32.mrf.mxu0
  %v1318 = vadd.f32 0.0, %v1317
  %1319 = vdwg.mxu0
  %v1320 = vadd.f32 %v1052, %v1174
  %v1321 = vadd.f32 %v1053, %v1176
  %v1322 = vadd.f32 %v1054, %v1245
  %v1323 = vadd.f32 %v1055, %v1247
  %v1324 = vadd.f32 %v1056, %v1316
  %v1325 = vadd.f32 %v1057, %v1318
  %v1326 = vld [vmem:[%s0] sm:$0xff]
  %v1327 = vld [vmem:[%s0 + $0x8] sm:$0xff]
  %v1328 = vld [vmem:[%s0 + $0x10] sm:$0xff]
  %v1329 = vld [vmem:[%s0 + $0x18] sm:$0xf]
  %s1330 = scalar_lea.vmem %s1, 40
  %v1331 = vld [vmem:[%s1330] sm:$0xff]
  %v1336 = vcombine.high %v1326, %v1326
  %v1337 = vcombine.high %v1327, %v1327
  %v1338 = vcombine.high %v1328, %v1328
  %1339 = vrot.lane.b32.xlu0 %v1326, 108
  %v1340 = vpop.permute.xlu0 %1339
  %1341 = vrot.lane.b32.xlu0 %v1336, 108
  %v1342 = vpop.permute.xlu0 %1341
  %1343 = vrot.lane.b32.xlu0 %v1327, 108
  %v1344 = vpop.permute.xlu0 %1343
  %1345 = vrot.lane.b32.xlu0 %v1337, 108
  %v1346 = vpop.permute.xlu0 %1345
  %1347 = vrot.lane.b32.xlu0 %v1328, 108
  %v1348 = vpop.permute.xlu0 %1347
  %1349 = vrot.lane.b32.xlu0 %v1338, 108
  %v1350 = vpop.permute.xlu0 %1349
  %1351 = vrot.lane.b32.xlu0 %v1329, 108
  %v1352 = vpop.permute.xlu0 %1351
  %vm1353 = vcmask 883712
  %v1354 = vsel %vm1353, %v1340, %v1342
  %v1355 = vsel %vm1353, %v1342, %v1344
  %v1356 = vsel %vm1353, %v1344, %v1346
  %v1357 = vsel %vm1353, %v1346, %v1348
  %v1358 = vsel %vm1353, %v1348, %v1350
  %v1359 = vsel %vm1353, %v1350, %v1352
  %v1361 = vsel %vm58, %v1331, 0
  %v1363 = vsel %vm62, %v1354, 0
  %v1365 = vsel %vm62, %v1355, 0
  %v1367 = vsel %vm62, %v1356, 0
  %v1369 = vsel %vm62, %v1357, 0
  %v1371 = vsel %vm62, %v1358, 0
  %v1373 = vsel %vm62, %v1359, 0
  %1375 = vmatprep.subr.mxu0 0.0
  %1376 = vmatpush1.msra.mxu0 0.0
  %1377 = vmatprep.subr.mxu0 0.0
  %1378 = vmatpush1.msra.mxu0 0.0
  %1379 = vmatprep.subr.mxu0 0.0
  %1380 = vmatpush1.msra.mxu0 0.0
  %1381 = vmatprep.subr.mxu0 0.0
  %1382 = vmatpush1.msra.mxu0 0.0
  %1383 = vmatprep.subr.mxu0 0.0
  %1384 = vmatpush1.msra.mxu0 0.0
  %1385 = vmatprep.subr.mxu0 0.0
  %1386 = vmatpush1.msra.mxu0 0.0
  %1387 = vmatprep.subr.mxu0 0.0
  %1388 = vmatpush1.msra.mxu0 0.0
  %1389 = vmatprep.subr.mxu0 0.0
  %1390 = vmatpush1.msra.mxu0 0.0
  %1391 = vmatprep.subr.mxu0 0.0
  %1392 = vmatpush1.msra.mxu0 0.0
  %1393 = vmatprep.subr.mxu0 0.0
  %1394 = vmatpush1.msra.mxu0 0.0
  %1395 = vmatprep.subr.mxu0 0.0
  %1396 = vmatpush1.msra.mxu0 0.0
  %1397 = vmatprep.subr.mxu0 0.0
  %1398 = vmatpush1.msra.mxu0 0.0
  %1399 = vmatprep.subr.mxu0 0.0
  %1400 = vmatpush1.msra.mxu0 0.0
  %1401 = vmatprep.subr.mxu0 0.0
  %1402 = vmatpush1.msra.mxu0 0.0
  %1403 = vmatprep.subr.mxu0 0.0
  %1404 = vmatpush1.msra.mxu0 0.0
  %1405 = vmatprep.subr.mxu0 %v1365
  %1406 = vmatpush1.msra.mxu0 %v1363
  %1407 = vmatprep.subr.mxu0 0.0
  %1408 = vmatpush2.msra.mxu0 0.0
  %1409 = vmatprep.subr.mxu0 0.0
  %1410 = vmatpush2.msra.mxu0 0.0
  %1411 = vmatprep.subr.mxu0 0.0
  %1412 = vmatpush2.msra.mxu0 0.0
  %1413 = vmatprep.subr.mxu0 0.0
  %1414 = vmatpush2.msra.mxu0 0.0
  %1415 = vmatprep.subr.mxu0 0.0
  %1416 = vmatpush2.msra.mxu0 0.0
  %1417 = vmatprep.subr.mxu0 0.0
  %1418 = vmatpush2.msra.mxu0 0.0
  %1419 = vmatprep.subr.mxu0 0.0
  %1420 = vmatpush2.msra.mxu0 0.0
  %1421 = vmatprep.subr.mxu0 0.0
  %1422 = vmatpush2.msra.mxu0 0.0
  %1423 = vmatprep.subr.mxu0 0.0
  %1424 = vmatpush2.msra.mxu0 0.0
  %1425 = vmatprep.subr.mxu0 0.0
  %1426 = vmatpush2.msra.mxu0 0.0
  %1427 = vmatprep.subr.mxu0 0.0
  %1428 = vmatpush2.msra.mxu0 0.0
  %1429 = vmatprep.subr.mxu0 0.0
  %1430 = vmatpush2.msra.mxu0 0.0
  %1431 = vmatprep.subr.mxu0 0.0
  %1432 = vmatpush2.msra.mxu0 0.0
  %1433 = vmatprep.subr.mxu0 0.0
  %1434 = vmatpush2.msra.mxu0 0.0
  %1435 = vmatprep.subr.mxu0 0.0
  %1436 = vmatpush2.msra.mxu0 0.0
  %1437 = vmatprep.subr.mxu0 0.0
  %1438 = vmatpush2.msra.mxu0 0.0
  %1439 = vmatprep.mubr.f32.mxu0 0.0
  %1440 = vmatmul.mubr.f32.gmra.mxu0 %v1361
  %v1441 = vpop.f32.mrf.mxu0
  %v1442 = vadd.f32 0.0, %v1441
  %v1443 = vpop.f32.mrf.mxu0
  %v1444 = vadd.f32 0.0, %v1443
  %1445 = vdwg.mxu0
  %1446 = vmatprep.subr.mxu0 0.0
  %1447 = vmatpush1.msra.mxu0 0.0
  %1448 = vmatprep.subr.mxu0 0.0
  %1449 = vmatpush1.msra.mxu0 0.0
  %1450 = vmatprep.subr.mxu0 0.0
  %1451 = vmatpush1.msra.mxu0 0.0
  %1452 = vmatprep.subr.mxu0 0.0
  %1453 = vmatpush1.msra.mxu0 0.0
  %1454 = vmatprep.subr.mxu0 0.0
  %1455 = vmatpush1.msra.mxu0 0.0
  %1456 = vmatprep.subr.mxu0 0.0
  %1457 = vmatpush1.msra.mxu0 0.0
  %1458 = vmatprep.subr.mxu0 0.0
  %1459 = vmatpush1.msra.mxu0 0.0
  %1460 = vmatprep.subr.mxu0 0.0
  %1461 = vmatpush1.msra.mxu0 0.0
  %1462 = vmatprep.subr.mxu0 0.0
  %1463 = vmatpush1.msra.mxu0 0.0
  %1464 = vmatprep.subr.mxu0 0.0
  %1465 = vmatpush1.msra.mxu0 0.0
  %1466 = vmatprep.subr.mxu0 0.0
  %1467 = vmatpush1.msra.mxu0 0.0
  %1468 = vmatprep.subr.mxu0 0.0
  %1469 = vmatpush1.msra.mxu0 0.0
  %1470 = vmatprep.subr.mxu0 0.0
  %1471 = vmatpush1.msra.mxu0 0.0
  %1472 = vmatprep.subr.mxu0 0.0
  %1473 = vmatpush1.msra.mxu0 0.0
  %1474 = vmatprep.subr.mxu0 0.0
  %1475 = vmatpush1.msra.mxu0 0.0
  %1476 = vmatprep.subr.mxu0 %v1369
  %1477 = vmatpush1.msra.mxu0 %v1367
  %1478 = vmatprep.subr.mxu0 0.0
  %1479 = vmatpush2.msra.mxu0 0.0
  %1480 = vmatprep.subr.mxu0 0.0
  %1481 = vmatpush2.msra.mxu0 0.0
  %1482 = vmatprep.subr.mxu0 0.0
  %1483 = vmatpush2.msra.mxu0 0.0
  %1484 = vmatprep.subr.mxu0 0.0
  %1485 = vmatpush2.msra.mxu0 0.0
  %1486 = vmatprep.subr.mxu0 0.0
  %1487 = vmatpush2.msra.mxu0 0.0
  %1488 = vmatprep.subr.mxu0 0.0
  %1489 = vmatpush2.msra.mxu0 0.0
  %1490 = vmatprep.subr.mxu0 0.0
  %1491 = vmatpush2.msra.mxu0 0.0
  %1492 = vmatprep.subr.mxu0 0.0
  %1493 = vmatpush2.msra.mxu0 0.0
  %1494 = vmatprep.subr.mxu0 0.0
  %1495 = vmatpush2.msra.mxu0 0.0
  %1496 = vmatprep.subr.mxu0 0.0
  %1497 = vmatpush2.msra.mxu0 0.0
  %1498 = vmatprep.subr.mxu0 0.0
  %1499 = vmatpush2.msra.mxu0 0.0
  %1500 = vmatprep.subr.mxu0 0.0
  %1501 = vmatpush2.msra.mxu0 0.0
  %1502 = vmatprep.subr.mxu0 0.0
  %1503 = vmatpush2.msra.mxu0 0.0
  %1504 = vmatprep.subr.mxu0 0.0
  %1505 = vmatpush2.msra.mxu0 0.0
  %1506 = vmatprep.subr.mxu0 0.0
  %1507 = vmatpush2.msra.mxu0 0.0
  %1508 = vmatprep.subr.mxu0 0.0
  %1509 = vmatpush2.msra.mxu0 0.0
  %1510 = vmatprep.mubr.f32.mxu0 0.0
  %1511 = vmatmul.mubr.f32.gmra.mxu0 %v1361
  %v1512 = vpop.f32.mrf.mxu0
  %v1513 = vadd.f32 0.0, %v1512
  %v1514 = vpop.f32.mrf.mxu0
  %v1515 = vadd.f32 0.0, %v1514
  %1516 = vdwg.mxu0
  %1517 = vmatprep.subr.mxu0 0.0
  %1518 = vmatpush1.msra.mxu0 0.0
  %1519 = vmatprep.subr.mxu0 0.0
  %1520 = vmatpush1.msra.mxu0 0.0
  %1521 = vmatprep.subr.mxu0 0.0
  %1522 = vmatpush1.msra.mxu0 0.0
  %1523 = vmatprep.subr.mxu0 0.0
  %1524 = vmatpush1.msra.mxu0 0.0
  %1525 = vmatprep.subr.mxu0 0.0
  %1526 = vmatpush1.msra.mxu0 0.0
  %1527 = vmatprep.subr.mxu0 0.0
  %1528 = vmatpush1.msra.mxu0 0.0
  %1529 = vmatprep.subr.mxu0 0.0
  %1530 = vmatpush1.msra.mxu0 0.0
  %1531 = vmatprep.subr.mxu0 0.0
  %1532 = vmatpush1.msra.mxu0 0.0
  %1533 = vmatprep.subr.mxu0 0.0
  %1534 = vmatpush1.msra.mxu0 0.0
  %1535 = vmatprep.subr.mxu0 0.0
  %1536 = vmatpush1.msra.mxu0 0.0
  %1537 = vmatprep.subr.mxu0 0.0
  %1538 = vmatpush1.msra.mxu0 0.0
  %1539 = vmatprep.subr.mxu0 0.0
  %1540 = vmatpush1.msra.mxu0 0.0
  %1541 = vmatprep.subr.mxu0 0.0
  %1542 = vmatpush1.msra.mxu0 0.0
  %1543 = vmatprep.subr.mxu0 0.0
  %1544 = vmatpush1.msra.mxu0 0.0
  %1545 = vmatprep.subr.mxu0 0.0
  %1546 = vmatpush1.msra.mxu0 0.0
  %1547 = vmatprep.subr.mxu0 %v1373
  %1548 = vmatpush1.msra.mxu0 %v1371
  %1549 = vmatprep.subr.mxu0 0.0
  %1550 = vmatpush2.msra.mxu0 0.0
  %1551 = vmatprep.subr.mxu0 0.0
  %1552 = vmatpush2.msra.mxu0 0.0
  %1553 = vmatprep.subr.mxu0 0.0
  %1554 = vmatpush2.msra.mxu0 0.0
  %1555 = vmatprep.subr.mxu0 0.0
  %1556 = vmatpush2.msra.mxu0 0.0
  %1557 = vmatprep.subr.mxu0 0.0
  %1558 = vmatpush2.msra.mxu0 0.0
  %1559 = vmatprep.subr.mxu0 0.0
  %1560 = vmatpush2.msra.mxu0 0.0
  %1561 = vmatprep.subr.mxu0 0.0
  %1562 = vmatpush2.msra.mxu0 0.0
  %1563 = vmatprep.subr.mxu0 0.0
  %1564 = vmatpush2.msra.mxu0 0.0
  %1565 = vmatprep.subr.mxu0 0.0
  %1566 = vmatpush2.msra.mxu0 0.0
  %1567 = vmatprep.subr.mxu0 0.0
  %1568 = vmatpush2.msra.mxu0 0.0
  %1569 = vmatprep.subr.mxu0 0.0
  %1570 = vmatpush2.msra.mxu0 0.0
  %1571 = vmatprep.subr.mxu0 0.0
  %1572 = vmatpush2.msra.mxu0 0.0
  %1573 = vmatprep.subr.mxu0 0.0
  %1574 = vmatpush2.msra.mxu0 0.0
  %1575 = vmatprep.subr.mxu0 0.0
  %1576 = vmatpush2.msra.mxu0 0.0
  %1577 = vmatprep.subr.mxu0 0.0
  %1578 = vmatpush2.msra.mxu0 0.0
  %1579 = vmatprep.subr.mxu0 0.0
  %1580 = vmatpush2.msra.mxu0 0.0
  %1581 = vmatprep.mubr.f32.mxu0 0.0
  %1582 = vmatmul.mubr.f32.gmra.mxu0 %v1361
  %v1583 = vpop.f32.mrf.mxu0
  %v1584 = vadd.f32 0.0, %v1583
  %v1585 = vpop.f32.mrf.mxu0
  %v1586 = vadd.f32 0.0, %v1585
  %1587 = vdwg.mxu0
  %v1588 = vadd.f32 %v1320, %v1442
  %v1589 = vadd.f32 %v1321, %v1444
  %v1590 = vadd.f32 %v1322, %v1513
  %v1591 = vadd.f32 %v1323, %v1515
  %v1592 = vadd.f32 %v1324, %v1584
  %v1593 = vadd.f32 %v1325, %v1586
  %v1594 = vld [vmem:[%s0] sm:$0xff]
  %v1595 = vld [vmem:[%s0 + $0x8] sm:$0xff]
  %v1596 = vld [vmem:[%s0 + $0x10] sm:$0xff]
  %v1597 = vld [vmem:[%s0 + $0x18] sm:$0xf]
  %s1598 = scalar_lea.vmem %s1, 48
  %v1599 = vld [vmem:[%s1598] sm:$0xff]
  %v1604 = vcombine.high %v1594, %v1594
  %v1605 = vcombine.high %v1595, %v1595
  %v1606 = vcombine.high %v1596, %v1596
  %1607 = vrot.lane.b32.xlu0 %v1594, 92
  %v1608 = vpop.permute.xlu0 %1607
  %1609 = vrot.lane.b32.xlu0 %v1604, 92
  %v1610 = vpop.permute.xlu0 %1609
  %1611 = vrot.lane.b32.xlu0 %v1595, 92
  %v1612 = vpop.permute.xlu0 %1611
  %1613 = vrot.lane.b32.xlu0 %v1605, 92
  %v1614 = vpop.permute.xlu0 %1613
  %1615 = vrot.lane.b32.xlu0 %v1596, 92
  %v1616 = vpop.permute.xlu0 %1615
  %1617 = vrot.lane.b32.xlu0 %v1606, 92
  %v1618 = vpop.permute.xlu0 %1617
  %1619 = vrot.lane.b32.xlu0 %v1597, 92
  %v1620 = vpop.permute.xlu0 %1619
  %vm1621 = vcmask 752640
  %v1622 = vsel %vm1621, %v1608, %v1610
  %v1623 = vsel %vm1621, %v1610, %v1612
  %v1624 = vsel %vm1621, %v1612, %v1614
  %v1625 = vsel %vm1621, %v1614, %v1616
  %v1626 = vsel %vm1621, %v1616, %v1618
  %v1627 = vsel %vm1621, %v1618, %v1620
  %v1629 = vsel %vm58, %v1599, 0
  %v1631 = vsel %vm62, %v1622, 0
  %v1633 = vsel %vm62, %v1623, 0
  %v1635 = vsel %vm62, %v1624, 0
  %v1637 = vsel %vm62, %v1625, 0
  %v1639 = vsel %vm62, %v1626, 0
  %v1641 = vsel %vm62, %v1627, 0
  %1643 = vmatprep.subr.mxu0 0.0
  %1644 = vmatpush1.msra.mxu0 0.0
  %1645 = vmatprep.subr.mxu0 0.0
  %1646 = vmatpush1.msra.mxu0 0.0
  %1647 = vmatprep.subr.mxu0 0.0
  %1648 = vmatpush1.msra.mxu0 0.0
  %1649 = vmatprep.subr.mxu0 0.0
  %1650 = vmatpush1.msra.mxu0 0.0
  %1651 = vmatprep.subr.mxu0 0.0
  %1652 = vmatpush1.msra.mxu0 0.0
  %1653 = vmatprep.subr.mxu0 0.0
  %1654 = vmatpush1.msra.mxu0 0.0
  %1655 = vmatprep.subr.mxu0 0.0
  %1656 = vmatpush1.msra.mxu0 0.0
  %1657 = vmatprep.subr.mxu0 0.0
  %1658 = vmatpush1.msra.mxu0 0.0
  %1659 = vmatprep.subr.mxu0 0.0
  %1660 = vmatpush1.msra.mxu0 0.0
  %1661 = vmatprep.subr.mxu0 0.0
  %1662 = vmatpush1.msra.mxu0 0.0
  %1663 = vmatprep.subr.mxu0 0.0
  %1664 = vmatpush1.msra.mxu0 0.0
  %1665 = vmatprep.subr.mxu0 0.0
  %1666 = vmatpush1.msra.mxu0 0.0
  %1667 = vmatprep.subr.mxu0 0.0
  %1668 = vmatpush1.msra.mxu0 0.0
  %1669 = vmatprep.subr.mxu0 0.0
  %1670 = vmatpush1.msra.mxu0 0.0
  %1671 = vmatprep.subr.mxu0 0.0
  %1672 = vmatpush1.msra.mxu0 0.0
  %1673 = vmatprep.subr.mxu0 %v1633
  %1674 = vmatpush1.msra.mxu0 %v1631
  %1675 = vmatprep.subr.mxu0 0.0
  %1676 = vmatpush2.msra.mxu0 0.0
  %1677 = vmatprep.subr.mxu0 0.0
  %1678 = vmatpush2.msra.mxu0 0.0
  %1679 = vmatprep.subr.mxu0 0.0
  %1680 = vmatpush2.msra.mxu0 0.0
  %1681 = vmatprep.subr.mxu0 0.0
  %1682 = vmatpush2.msra.mxu0 0.0
  %1683 = vmatprep.subr.mxu0 0.0
  %1684 = vmatpush2.msra.mxu0 0.0
  %1685 = vmatprep.subr.mxu0 0.0
  %1686 = vmatpush2.msra.mxu0 0.0
  %1687 = vmatprep.subr.mxu0 0.0
  %1688 = vmatpush2.msra.mxu0 0.0
  %1689 = vmatprep.subr.mxu0 0.0
  %1690 = vmatpush2.msra.mxu0 0.0
  %1691 = vmatprep.subr.mxu0 0.0
  %1692 = vmatpush2.msra.mxu0 0.0
  %1693 = vmatprep.subr.mxu0 0.0
  %1694 = vmatpush2.msra.mxu0 0.0
  %1695 = vmatprep.subr.mxu0 0.0
  %1696 = vmatpush2.msra.mxu0 0.0
  %1697 = vmatprep.subr.mxu0 0.0
  %1698 = vmatpush2.msra.mxu0 0.0
  %1699 = vmatprep.subr.mxu0 0.0
  %1700 = vmatpush2.msra.mxu0 0.0
  %1701 = vmatprep.subr.mxu0 0.0
  %1702 = vmatpush2.msra.mxu0 0.0
  %1703 = vmatprep.subr.mxu0 0.0
  %1704 = vmatpush2.msra.mxu0 0.0
  %1705 = vmatprep.subr.mxu0 0.0
  %1706 = vmatpush2.msra.mxu0 0.0
  %1707 = vmatprep.mubr.f32.mxu0 0.0
  %1708 = vmatmul.mubr.f32.gmra.mxu0 %v1629
  %v1709 = vpop.f32.mrf.mxu0
  %v1710 = vadd.f32 0.0, %v1709
  %v1711 = vpop.f32.mrf.mxu0
  %v1712 = vadd.f32 0.0, %v1711
  %1713 = vdwg.mxu0
  %1714 = vmatprep.subr.mxu0 0.0
  %1715 = vmatpush1.msra.mxu0 0.0
  %1716 = vmatprep.subr.mxu0 0.0
  %1717 = vmatpush1.msra.mxu0 0.0
  %1718 = vmatprep.subr.mxu0 0.0
  %1719 = vmatpush1.msra.mxu0 0.0
  %1720 = vmatprep.subr.mxu0 0.0
  %1721 = vmatpush1.msra.mxu0 0.0
  %1722 = vmatprep.subr.mxu0 0.0
  %1723 = vmatpush1.msra.mxu0 0.0
  %1724 = vmatprep.subr.mxu0 0.0
  %1725 = vmatpush1.msra.mxu0 0.0
  %1726 = vmatprep.subr.mxu0 0.0
  %1727 = vmatpush1.msra.mxu0 0.0
  %1728 = vmatprep.subr.mxu0 0.0
  %1729 = vmatpush1.msra.mxu0 0.0
  %1730 = vmatprep.subr.mxu0 0.0
  %1731 = vmatpush1.msra.mxu0 0.0
  %1732 = vmatprep.subr.mxu0 0.0
  %1733 = vmatpush1.msra.mxu0 0.0
  %1734 = vmatprep.subr.mxu0 0.0
  %1735 = vmatpush1.msra.mxu0 0.0
  %1736 = vmatprep.subr.mxu0 0.0
  %1737 = vmatpush1.msra.mxu0 0.0
  %1738 = vmatprep.subr.mxu0 0.0
  %1739 = vmatpush1.msra.mxu0 0.0
  %1740 = vmatprep.subr.mxu0 0.0
  %1741 = vmatpush1.msra.mxu0 0.0
  %1742 = vmatprep.subr.mxu0 0.0
  %1743 = vmatpush1.msra.mxu0 0.0
  %1744 = vmatprep.subr.mxu0 %v1637
  %1745 = vmatpush1.msra.mxu0 %v1635
  %1746 = vmatprep.subr.mxu0 0.0
  %1747 = vmatpush2.msra.mxu0 0.0
  %1748 = vmatprep.subr.mxu0 0.0
  %1749 = vmatpush2.msra.mxu0 0.0
  %1750 = vmatprep.subr.mxu0 0.0
  %1751 = vmatpush2.msra.mxu0 0.0
  %1752 = vmatprep.subr.mxu0 0.0
  %1753 = vmatpush2.msra.mxu0 0.0
  %1754 = vmatprep.subr.mxu0 0.0
  %1755 = vmatpush2.msra.mxu0 0.0
  %1756 = vmatprep.subr.mxu0 0.0
  %1757 = vmatpush2.msra.mxu0 0.0
  %1758 = vmatprep.subr.mxu0 0.0
  %1759 = vmatpush2.msra.mxu0 0.0
  %1760 = vmatprep.subr.mxu0 0.0
  %1761 = vmatpush2.msra.mxu0 0.0
  %1762 = vmatprep.subr.mxu0 0.0
  %1763 = vmatpush2.msra.mxu0 0.0
  %1764 = vmatprep.subr.mxu0 0.0
  %1765 = vmatpush2.msra.mxu0 0.0
  %1766 = vmatprep.subr.mxu0 0.0
  %1767 = vmatpush2.msra.mxu0 0.0
  %1768 = vmatprep.subr.mxu0 0.0
  %1769 = vmatpush2.msra.mxu0 0.0
  %1770 = vmatprep.subr.mxu0 0.0
  %1771 = vmatpush2.msra.mxu0 0.0
  %1772 = vmatprep.subr.mxu0 0.0
  %1773 = vmatpush2.msra.mxu0 0.0
  %1774 = vmatprep.subr.mxu0 0.0
  %1775 = vmatpush2.msra.mxu0 0.0
  %1776 = vmatprep.subr.mxu0 0.0
  %1777 = vmatpush2.msra.mxu0 0.0
  %1778 = vmatprep.mubr.f32.mxu0 0.0
  %1779 = vmatmul.mubr.f32.gmra.mxu0 %v1629
  %v1780 = vpop.f32.mrf.mxu0
  %v1781 = vadd.f32 0.0, %v1780
  %v1782 = vpop.f32.mrf.mxu0
  %v1783 = vadd.f32 0.0, %v1782
  %1784 = vdwg.mxu0
  %1785 = vmatprep.subr.mxu0 0.0
  %1786 = vmatpush1.msra.mxu0 0.0
  %1787 = vmatprep.subr.mxu0 0.0
  %1788 = vmatpush1.msra.mxu0 0.0
  %1789 = vmatprep.subr.mxu0 0.0
  %1790 = vmatpush1.msra.mxu0 0.0
  %1791 = vmatprep.subr.mxu0 0.0
  %1792 = vmatpush1.msra.mxu0 0.0
  %1793 = vmatprep.subr.mxu0 0.0
  %1794 = vmatpush1.msra.mxu0 0.0
  %1795 = vmatprep.subr.mxu0 0.0
  %1796 = vmatpush1.msra.mxu0 0.0
  %1797 = vmatprep.subr.mxu0 0.0
  %1798 = vmatpush1.msra.mxu0 0.0
  %1799 = vmatprep.subr.mxu0 0.0
  %1800 = vmatpush1.msra.mxu0 0.0
  %1801 = vmatprep.subr.mxu0 0.0
  %1802 = vmatpush1.msra.mxu0 0.0
  %1803 = vmatprep.subr.mxu0 0.0
  %1804 = vmatpush1.msra.mxu0 0.0
  %1805 = vmatprep.subr.mxu0 0.0
  %1806 = vmatpush1.msra.mxu0 0.0
  %1807 = vmatprep.subr.mxu0 0.0
  %1808 = vmatpush1.msra.mxu0 0.0
  %1809 = vmatprep.subr.mxu0 0.0
  %1810 = vmatpush1.msra.mxu0 0.0
  %1811 = vmatprep.subr.mxu0 0.0
  %1812 = vmatpush1.msra.mxu0 0.0
  %1813 = vmatprep.subr.mxu0 0.0
  %1814 = vmatpush1.msra.mxu0 0.0
  %1815 = vmatprep.subr.mxu0 %v1641
  %1816 = vmatpush1.msra.mxu0 %v1639
  %1817 = vmatprep.subr.mxu0 0.0
  %1818 = vmatpush2.msra.mxu0 0.0
  %1819 = vmatprep.subr.mxu0 0.0
  %1820 = vmatpush2.msra.mxu0 0.0
  %1821 = vmatprep.subr.mxu0 0.0
  %1822 = vmatpush2.msra.mxu0 0.0
  %1823 = vmatprep.subr.mxu0 0.0
  %1824 = vmatpush2.msra.mxu0 0.0
  %1825 = vmatprep.subr.mxu0 0.0
  %1826 = vmatpush2.msra.mxu0 0.0
  %1827 = vmatprep.subr.mxu0 0.0
  %1828 = vmatpush2.msra.mxu0 0.0
  %1829 = vmatprep.subr.mxu0 0.0
  %1830 = vmatpush2.msra.mxu0 0.0
  %1831 = vmatprep.subr.mxu0 0.0
  %1832 = vmatpush2.msra.mxu0 0.0
  %1833 = vmatprep.subr.mxu0 0.0
  %1834 = vmatpush2.msra.mxu0 0.0
  %1835 = vmatprep.subr.mxu0 0.0
  %1836 = vmatpush2.msra.mxu0 0.0
  %1837 = vmatprep.subr.mxu0 0.0
  %1838 = vmatpush2.msra.mxu0 0.0
  %1839 = vmatprep.subr.mxu0 0.0
  %1840 = vmatpush2.msra.mxu0 0.0
  %1841 = vmatprep.subr.mxu0 0.0
  %1842 = vmatpush2.msra.mxu0 0.0
  %1843 = vmatprep.subr.mxu0 0.0
  %1844 = vmatpush2.msra.mxu0 0.0
  %1845 = vmatprep.subr.mxu0 0.0
  %1846 = vmatpush2.msra.mxu0 0.0
  %1847 = vmatprep.subr.mxu0 0.0
  %1848 = vmatpush2.msra.mxu0 0.0
  %1849 = vmatprep.mubr.f32.mxu0 0.0
  %1850 = vmatmul.mubr.f32.gmra.mxu0 %v1629
  %v1851 = vpop.f32.mrf.mxu0
  %v1852 = vadd.f32 0.0, %v1851
  %v1853 = vpop.f32.mrf.mxu0
  %v1854 = vadd.f32 0.0, %v1853
  %1855 = vdwg.mxu0
  %v1856 = vadd.f32 %v1588, %v1710
  %v1857 = vadd.f32 %v1589, %v1712
  %v1858 = vadd.f32 %v1590, %v1781
  %v1859 = vadd.f32 %v1591, %v1783
  %v1860 = vadd.f32 %v1592, %v1852
  %v1861 = vadd.f32 %v1593, %v1854
  %v1862 = vld [vmem:[%s0] sm:$0xff]
  %v1863 = vld [vmem:[%s0 + $0x8] sm:$0xff]
  %v1864 = vld [vmem:[%s0 + $0x10] sm:$0xff]
  %v1865 = vld [vmem:[%s0 + $0x18] sm:$0xf]
  %s1866 = scalar_lea.vmem %s1, 56
  %v1867 = vld [vmem:[%s1866] sm:$0xff]
  %v1872 = vcombine.high %v1862, %v1862
  %v1873 = vcombine.high %v1863, %v1863
  %v1874 = vcombine.high %v1864, %v1864
  %1875 = vrot.lane.b32.xlu0 %v1862, 91
  %v1876 = vpop.permute.xlu0 %1875
  %1877 = vrot.lane.b32.xlu0 %v1872, 91
  %v1878 = vpop.permute.xlu0 %1877
  %1879 = vrot.lane.b32.xlu0 %v1863, 91
  %v1880 = vpop.permute.xlu0 %1879
  %1881 = vrot.lane.b32.xlu0 %v1873, 91
  %v1882 = vpop.permute.xlu0 %1881
  %1883 = vrot.lane.b32.xlu0 %v1864, 91
  %v1884 = vpop.permute.xlu0 %1883
  %1885 = vrot.lane.b32.xlu0 %v1874, 91
  %v1886 = vpop.permute.xlu0 %1885
  %1887 = vrot.lane.b32.xlu0 %v1865, 91
  %v1888 = vpop.permute.xlu0 %1887
  %vm1889 = vcmask 744448
  %v1890 = vsel %vm1889, %v1876, %v1878
  %v1891 = vsel %vm1889, %v1878, %v1880
  %v1892 = vsel %vm1889, %v1880, %v1882
  %v1893 = vsel %vm1889, %v1882, %v1884
  %v1894 = vsel %vm1889, %v1884, %v1886
  %v1895 = vsel %vm1889, %v1886, %v1888
  %v1897 = vsel %vm58, %v1867, 0
  %v1899 = vsel %vm62, %v1890, 0
  %v1901 = vsel %vm62, %v1891, 0
  %v1903 = vsel %vm62, %v1892, 0
  %v1905 = vsel %vm62, %v1893, 0
  %v1907 = vsel %vm62, %v1894, 0
  %v1909 = vsel %vm62, %v1895, 0
  %1911 = vmatprep.subr.mxu0 0.0
  %1912 = vmatpush1.msra.mxu0 0.0
  %1913 = vmatprep.subr.mxu0 0.0
  %1914 = vmatpush1.msra.mxu0 0.0
  %1915 = vmatprep.subr.mxu0 0.0
  %1916 = vmatpush1.msra.mxu0 0.0
  %1917 = vmatprep.subr.mxu0 0.0
  %1918 = vmatpush1.msra.mxu0 0.0
  %1919 = vmatprep.subr.mxu0 0.0
  %1920 = vmatpush1.msra.mxu0 0.0
  %1921 = vmatprep.subr.mxu0 0.0
  %1922 = vmatpush1.msra.mxu0 0.0
  %1923 = vmatprep.subr.mxu0 0.0
  %1924 = vmatpush1.msra.mxu0 0.0
  %1925 = vmatprep.subr.mxu0 0.0
  %1926 = vmatpush1.msra.mxu0 0.0
  %1927 = vmatprep.subr.mxu0 0.0
  %1928 = vmatpush1.msra.mxu0 0.0
  %1929 = vmatprep.subr.mxu0 0.0
  %1930 = vmatpush1.msra.mxu0 0.0
  %1931 = vmatprep.subr.mxu0 0.0
  %1932 = vmatpush1.msra.mxu0 0.0
  %1933 = vmatprep.subr.mxu0 0.0
  %1934 = vmatpush1.msra.mxu0 0.0
  %1935 = vmatprep.subr.mxu0 0.0
  %1936 = vmatpush1.msra.mxu0 0.0
  %1937 = vmatprep.subr.mxu0 0.0
  %1938 = vmatpush1.msra.mxu0 0.0
  %1939 = vmatprep.subr.mxu0 0.0
  %1940 = vmatpush1.msra.mxu0 0.0
  %1941 = vmatprep.subr.mxu0 %v1901
  %1942 = vmatpush1.msra.mxu0 %v1899
  %1943 = vmatprep.subr.mxu0 0.0
  %1944 = vmatpush2.msra.mxu0 0.0
  %1945 = vmatprep.subr.mxu0 0.0
  %1946 = vmatpush2.msra.mxu0 0.0
  %1947 = vmatprep.subr.mxu0 0.0
  %1948 = vmatpush2.msra.mxu0 0.0
  %1949 = vmatprep.subr.mxu0 0.0
  %1950 = vmatpush2.msra.mxu0 0.0
  %1951 = vmatprep.subr.mxu0 0.0
  %1952 = vmatpush2.msra.mxu0 0.0
  %1953 = vmatprep.subr.mxu0 0.0
  %1954 = vmatpush2.msra.mxu0 0.0
  %1955 = vmatprep.subr.mxu0 0.0
  %1956 = vmatpush2.msra.mxu0 0.0
  %1957 = vmatprep.subr.mxu0 0.0
  %1958 = vmatpush2.msra.mxu0 0.0
  %1959 = vmatprep.subr.mxu0 0.0
  %1960 = vmatpush2.msra.mxu0 0.0
  %1961 = vmatprep.subr.mxu0 0.0
  %1962 = vmatpush2.msra.mxu0 0.0
  %1963 = vmatprep.subr.mxu0 0.0
  %1964 = vmatpush2.msra.mxu0 0.0
  %1965 = vmatprep.subr.mxu0 0.0
  %1966 = vmatpush2.msra.mxu0 0.0
  %1967 = vmatprep.subr.mxu0 0.0
  %1968 = vmatpush2.msra.mxu0 0.0
  %1969 = vmatprep.subr.mxu0 0.0
  %1970 = vmatpush2.msra.mxu0 0.0
  %1971 = vmatprep.subr.mxu0 0.0
  %1972 = vmatpush2.msra.mxu0 0.0
  %1973 = vmatprep.subr.mxu0 0.0
  %1974 = vmatpush2.msra.mxu0 0.0
  %1975 = vmatprep.mubr.f32.mxu0 0.0
  %1976 = vmatmul.mubr.f32.gmra.mxu0 %v1897
  %v1977 = vpop.f32.mrf.mxu0
  %v1978 = vadd.f32 0.0, %v1977
  %v1979 = vpop.f32.mrf.mxu0
  %v1980 = vadd.f32 0.0, %v1979
  %1981 = vdwg.mxu0
  %1982 = vmatprep.subr.mxu0 0.0
  %1983 = vmatpush1.msra.mxu0 0.0
  %1984 = vmatprep.subr.mxu0 0.0
  %1985 = vmatpush1.msra.mxu0 0.0
  %1986 = vmatprep.subr.mxu0 0.0
  %1987 = vmatpush1.msra.mxu0 0.0
  %1988 = vmatprep.subr.mxu0 0.0
  %1989 = vmatpush1.msra.mxu0 0.0
  %1990 = vmatprep.subr.mxu0 0.0
  %1991 = vmatpush1.msra.mxu0 0.0
  %1992 = vmatprep.subr.mxu0 0.0
  %1993 = vmatpush1.msra.mxu0 0.0
  %1994 = vmatprep.subr.mxu0 0.0
  %1995 = vmatpush1.msra.mxu0 0.0
  %1996 = vmatprep.subr.mxu0 0.0
  %1997 = vmatpush1.msra.mxu0 0.0
  %1998 = vmatprep.subr.mxu0 0.0
  %1999 = vmatpush1.msra.mxu0 0.0
  %2000 = vmatprep.subr.mxu0 0.0
  %2001 = vmatpush1.msra.mxu0 0.0
  %2002 = vmatprep.subr.mxu0 0.0
  %2003 = vmatpush1.msra.mxu0 0.0
  %2004 = vmatprep.subr.mxu0 0.0
  %2005 = vmatpush1.msra.mxu0 0.0
  %2006 = vmatprep.subr.mxu0 0.0
  %2007 = vmatpush1.msra.mxu0 0.0
  %2008 = vmatprep.subr.mxu0 0.0
  %2009 = vmatpush1.msra.mxu0 0.0
  %2010 = vmatprep.subr.mxu0 0.0
  %2011 = vmatpush1.msra.mxu0 0.0
  %2012 = vmatprep.subr.mxu0 %v1905
  %2013 = vmatpush1.msra.mxu0 %v1903
  %2014 = vmatprep.subr.mxu0 0.0
  %2015 = vmatpush2.msra.mxu0 0.0
  %2016 = vmatprep.subr.mxu0 0.0
  %2017 = vmatpush2.msra.mxu0 0.0
  %2018 = vmatprep.subr.mxu0 0.0
  %2019 = vmatpush2.msra.mxu0 0.0
  %2020 = vmatprep.subr.mxu0 0.0
  %2021 = vmatpush2.msra.mxu0 0.0
  %2022 = vmatprep.subr.mxu0 0.0
  %2023 = vmatpush2.msra.mxu0 0.0
  %2024 = vmatprep.subr.mxu0 0.0
  %2025 = vmatpush2.msra.mxu0 0.0
  %2026 = vmatprep.subr.mxu0 0.0
  %2027 = vmatpush2.msra.mxu0 0.0
  %2028 = vmatprep.subr.mxu0 0.0
  %2029 = vmatpush2.msra.mxu0 0.0
  %2030 = vmatprep.subr.mxu0 0.0
  %2031 = vmatpush2.msra.mxu0 0.0
  %2032 = vmatprep.subr.mxu0 0.0
  %2033 = vmatpush2.msra.mxu0 0.0
  %2034 = vmatprep.subr.mxu0 0.0
  %2035 = vmatpush2.msra.mxu0 0.0
  %2036 = vmatprep.subr.mxu0 0.0
  %2037 = vmatpush2.msra.mxu0 0.0
  %2038 = vmatprep.subr.mxu0 0.0
  %2039 = vmatpush2.msra.mxu0 0.0
  %2040 = vmatprep.subr.mxu0 0.0
  %2041 = vmatpush2.msra.mxu0 0.0
  %2042 = vmatprep.subr.mxu0 0.0
  %2043 = vmatpush2.msra.mxu0 0.0
  %2044 = vmatprep.subr.mxu0 0.0
  %2045 = vmatpush2.msra.mxu0 0.0
  %2046 = vmatprep.mubr.f32.mxu0 0.0
  %2047 = vmatmul.mubr.f32.gmra.mxu0 %v1897
  %v2048 = vpop.f32.mrf.mxu0
  %v2049 = vadd.f32 0.0, %v2048
  %v2050 = vpop.f32.mrf.mxu0
  %v2051 = vadd.f32 0.0, %v2050
  %2052 = vdwg.mxu0
  %2053 = vmatprep.subr.mxu0 0.0
  %2054 = vmatpush1.msra.mxu0 0.0
  %2055 = vmatprep.subr.mxu0 0.0
  %2056 = vmatpush1.msra.mxu0 0.0
  %2057 = vmatprep.subr.mxu0 0.0
  %2058 = vmatpush1.msra.mxu0 0.0
  %2059 = vmatprep.subr.mxu0 0.0
  %2060 = vmatpush1.msra.mxu0 0.0
  %2061 = vmatprep.subr.mxu0 0.0
  %2062 = vmatpush1.msra.mxu0 0.0
  %2063 = vmatprep.subr.mxu0 0.0
  %2064 = vmatpush1.msra.mxu0 0.0
  %2065 = vmatprep.subr.mxu0 0.0
  %2066 = vmatpush1.msra.mxu0 0.0
  %2067 = vmatprep.subr.mxu0 0.0
  %2068 = vmatpush1.msra.mxu0 0.0
  %2069 = vmatprep.subr.mxu0 0.0
  %2070 = vmatpush1.msra.mxu0 0.0
  %2071 = vmatprep.subr.mxu0 0.0
  %2072 = vmatpush1.msra.mxu0 0.0
  %2073 = vmatprep.subr.mxu0 0.0
  %2074 = vmatpush1.msra.mxu0 0.0
  %2075 = vmatprep.subr.mxu0 0.0
  %2076 = vmatpush1.msra.mxu0 0.0
  %2077 = vmatprep.subr.mxu0 0.0
  %2078 = vmatpush1.msra.mxu0 0.0
  %2079 = vmatprep.subr.mxu0 0.0
  %2080 = vmatpush1.msra.mxu0 0.0
  %2081 = vmatprep.subr.mxu0 0.0
  %2082 = vmatpush1.msra.mxu0 0.0
  %2083 = vmatprep.subr.mxu0 %v1909
  %2084 = vmatpush1.msra.mxu0 %v1907
  %2085 = vmatprep.subr.mxu0 0.0
  %2086 = vmatpush2.msra.mxu0 0.0
  %2087 = vmatprep.subr.mxu0 0.0
  %2088 = vmatpush2.msra.mxu0 0.0
  %2089 = vmatprep.subr.mxu0 0.0
  %2090 = vmatpush2.msra.mxu0 0.0
  %2091 = vmatprep.subr.mxu0 0.0
  %2092 = vmatpush2.msra.mxu0 0.0
  %2093 = vmatprep.subr.mxu0 0.0
  %2094 = vmatpush2.msra.mxu0 0.0
  %2095 = vmatprep.subr.mxu0 0.0
  %2096 = vmatpush2.msra.mxu0 0.0
  %2097 = vmatprep.subr.mxu0 0.0
  %2098 = vmatpush2.msra.mxu0 0.0
  %2099 = vmatprep.subr.mxu0 0.0
  %2100 = vmatpush2.msra.mxu0 0.0
  %2101 = vmatprep.subr.mxu0 0.0
  %2102 = vmatpush2.msra.mxu0 0.0
  %2103 = vmatprep.subr.mxu0 0.0
  %2104 = vmatpush2.msra.mxu0 0.0
  %2105 = vmatprep.subr.mxu0 0.0
  %2106 = vmatpush2.msra.mxu0 0.0
  %2107 = vmatprep.subr.mxu0 0.0
  %2108 = vmatpush2.msra.mxu0 0.0
  %2109 = vmatprep.subr.mxu0 0.0
  %2110 = vmatpush2.msra.mxu0 0.0
  %2111 = vmatprep.subr.mxu0 0.0
  %2112 = vmatpush2.msra.mxu0 0.0
  %2113 = vmatprep.subr.mxu0 0.0
  %2114 = vmatpush2.msra.mxu0 0.0
  %2115 = vmatprep.subr.mxu0 0.0
  %2116 = vmatpush2.msra.mxu0 0.0
  %2117 = vmatprep.mubr.f32.mxu0 0.0
  %2118 = vmatmul.mubr.f32.gmra.mxu0 %v1897
  %v2119 = vpop.f32.mrf.mxu0
  %v2120 = vadd.f32 0.0, %v2119
  %v2121 = vpop.f32.mrf.mxu0
  %v2122 = vadd.f32 0.0, %v2121
  %2123 = vdwg.mxu0
  %v2124 = vadd.f32 %v1856, %v1978
  %v2125 = vadd.f32 %v1857, %v1980
  %v2126 = vadd.f32 %v1858, %v2049
  %v2127 = vadd.f32 %v1859, %v2051
  %v2128 = vadd.f32 %v1860, %v2120
  %v2129 = vadd.f32 %v1861, %v2122
  %v2130 = vld [vmem:[%s0] sm:$0xff]
  %v2131 = vld [vmem:[%s0 + $0x8] sm:$0xff]
  %v2132 = vld [vmem:[%s0 + $0x10] sm:$0xff]
  %v2133 = vld [vmem:[%s0 + $0x18] sm:$0xf]
  %s2134 = scalar_lea.vmem %s1, 64
  %v2135 = vld [vmem:[%s2134] sm:$0xff]
  %v2140 = vcombine.high %v2130, %v2130
  %v2141 = vcombine.high %v2131, %v2131
  %v2142 = vcombine.high %v2132, %v2132
  %2143 = vrot.lane.b32.xlu0 %v2130, 90
  %v2144 = vpop.permute.xlu0 %2143
  %2145 = vrot.lane.b32.xlu0 %v2140, 90
  %v2146 = vpop.permute.xlu0 %2145
  %2147 = vrot.lane.b32.xlu0 %v2131, 90
  %v2148 = vpop.permute.xlu0 %2147
  %2149 = vrot.lane.b32.xlu0 %v2141, 90
  %v2150 = vpop.permute.xlu0 %2149
  %2151 = vrot.lane.b32.xlu0 %v2132, 90
  %v2152 = vpop.permute.xlu0 %2151
  %2153 = vrot.lane.b32.xlu0 %v2142, 90
  %v2154 = vpop.permute.xlu0 %2153
  %2155 = vrot.lane.b32.xlu0 %v2133, 90
  %v2156 = vpop.permute.xlu0 %2155
  %vm2157 = vcmask 736256
  %v2158 = vsel %vm2157, %v2144, %v2146
  %v2159 = vsel %vm2157, %v2146, %v2148
  %v2160 = vsel %vm2157, %v2148, %v2150
  %v2161 = vsel %vm2157, %v2150, %v2152
  %v2162 = vsel %vm2157, %v2152, %v2154
  %v2163 = vsel %vm2157, %v2154, %v2156
  %v2165 = vsel %vm58, %v2135, 0
  %v2167 = vsel %vm62, %v2158, 0
  %v2169 = vsel %vm62, %v2159, 0
  %v2171 = vsel %vm62, %v2160, 0
  %v2173 = vsel %vm62, %v2161, 0
  %v2175 = vsel %vm62, %v2162, 0
  %v2177 = vsel %vm62, %v2163, 0
  %2179 = vmatprep.subr.mxu0 0.0
  %2180 = vmatpush1.msra.mxu0 0.0
  %2181 = vmatprep.subr.mxu0 0.0
  %2182 = vmatpush1.msra.mxu0 0.0
  %2183 = vmatprep.subr.mxu0 0.0
  %2184 = vmatpush1.msra.mxu0 0.0
  %2185 = vmatprep.subr.mxu0 0.0
  %2186 = vmatpush1.msra.mxu0 0.0
  %2187 = vmatprep.subr.mxu0 0.0
  %2188 = vmatpush1.msra.mxu0 0.0
  %2189 = vmatprep.subr.mxu0 0.0
  %2190 = vmatpush1.msra.mxu0 0.0
  %2191 = vmatprep.subr.mxu0 0.0
  %2192 = vmatpush1.msra.mxu0 0.0
  %2193 = vmatprep.subr.mxu0 0.0
  %2194 = vmatpush1.msra.mxu0 0.0
  %2195 = vmatprep.subr.mxu0 0.0
  %2196 = vmatpush1.msra.mxu0 0.0
  %2197 = vmatprep.subr.mxu0 0.0
  %2198 = vmatpush1.msra.mxu0 0.0
  %2199 = vmatprep.subr.mxu0 0.0
  %2200 = vmatpush1.msra.mxu0 0.0
  %2201 = vmatprep.subr.mxu0 0.0
  %2202 = vmatpush1.msra.mxu0 0.0
  %2203 = vmatprep.subr.mxu0 0.0
  %2204 = vmatpush1.msra.mxu0 0.0
  %2205 = vmatprep.subr.mxu0 0.0
  %2206 = vmatpush1.msra.mxu0 0.0
  %2207 = vmatprep.subr.mxu0 0.0
  %2208 = vmatpush1.msra.mxu0 0.0
  %2209 = vmatprep.subr.mxu0 %v2169
  %2210 = vmatpush1.msra.mxu0 %v2167
  %2211 = vmatprep.subr.mxu0 0.0
  %2212 = vmatpush2.msra.mxu0 0.0
  %2213 = vmatprep.subr.mxu0 0.0
  %2214 = vmatpush2.msra.mxu0 0.0
  %2215 = vmatprep.subr.mxu0 0.0
  %2216 = vmatpush2.msra.mxu0 0.0
  %2217 = vmatprep.subr.mxu0 0.0
  %2218 = vmatpush2.msra.mxu0 0.0
  %2219 = vmatprep.subr.mxu0 0.0
  %2220 = vmatpush2.msra.mxu0 0.0
  %2221 = vmatprep.subr.mxu0 0.0
  %2222 = vmatpush2.msra.mxu0 0.0
  %2223 = vmatprep.subr.mxu0 0.0
  %2224 = vmatpush2.msra.mxu0 0.0
  %2225 = vmatprep.subr.mxu0 0.0
  %2226 = vmatpush2.msra.mxu0 0.0
  %2227 = vmatprep.subr.mxu0 0.0
  %2228 = vmatpush2.msra.mxu0 0.0
  %2229 = vmatprep.subr.mxu0 0.0
  %2230 = vmatpush2.msra.mxu0 0.0
  %2231 = vmatprep.subr.mxu0 0.0
  %2232 = vmatpush2.msra.mxu0 0.0
  %2233 = vmatprep.subr.mxu0 0.0
  %2234 = vmatpush2.msra.mxu0 0.0
  %2235 = vmatprep.subr.mxu0 0.0
  %2236 = vmatpush2.msra.mxu0 0.0
  %2237 = vmatprep.subr.mxu0 0.0
  %2238 = vmatpush2.msra.mxu0 0.0
  %2239 = vmatprep.subr.mxu0 0.0
  %2240 = vmatpush2.msra.mxu0 0.0
  %2241 = vmatprep.subr.mxu0 0.0
  %2242 = vmatpush2.msra.mxu0 0.0
  %2243 = vmatprep.mubr.f32.mxu0 0.0
  %2244 = vmatmul.mubr.f32.gmra.mxu0 %v2165
  %v2245 = vpop.f32.mrf.mxu0
  %v2246 = vadd.f32 0.0, %v2245
  %v2247 = vpop.f32.mrf.mxu0
  %v2248 = vadd.f32 0.0, %v2247
  %2249 = vdwg.mxu0
  %2250 = vmatprep.subr.mxu0 0.0
  %2251 = vmatpush1.msra.mxu0 0.0
  %2252 = vmatprep.subr.mxu0 0.0
  %2253 = vmatpush1.msra.mxu0 0.0
  %2254 = vmatprep.subr.mxu0 0.0
  %2255 = vmatpush1.msra.mxu0 0.0
  %2256 = vmatprep.subr.mxu0 0.0
  %2257 = vmatpush1.msra.mxu0 0.0
  %2258 = vmatprep.subr.mxu0 0.0
  %2259 = vmatpush1.msra.mxu0 0.0
  %2260 = vmatprep.subr.mxu0 0.0
  %2261 = vmatpush1.msra.mxu0 0.0
  %2262 = vmatprep.subr.mxu0 0.0
  %2263 = vmatpush1.msra.mxu0 0.0
  %2264 = vmatprep.subr.mxu0 0.0
  %2265 = vmatpush1.msra.mxu0 0.0
  %2266 = vmatprep.subr.mxu0 0.0
  %2267 = vmatpush1.msra.mxu0 0.0
  %2268 = vmatprep.subr.mxu0 0.0
  %2269 = vmatpush1.msra.mxu0 0.0
  %2270 = vmatprep.subr.mxu0 0.0
  %2271 = vmatpush1.msra.mxu0 0.0
  %2272 = vmatprep.subr.mxu0 0.0
  %2273 = vmatpush1.msra.mxu0 0.0
  %2274 = vmatprep.subr.mxu0 0.0
  %2275 = vmatpush1.msra.mxu0 0.0
  %2276 = vmatprep.subr.mxu0 0.0
  %2277 = vmatpush1.msra.mxu0 0.0
  %2278 = vmatprep.subr.mxu0 0.0
  %2279 = vmatpush1.msra.mxu0 0.0
  %2280 = vmatprep.subr.mxu0 %v2173
  %2281 = vmatpush1.msra.mxu0 %v2171
  %2282 = vmatprep.subr.mxu0 0.0
  %2283 = vmatpush2.msra.mxu0 0.0
  %2284 = vmatprep.subr.mxu0 0.0
  %2285 = vmatpush2.msra.mxu0 0.0
  %2286 = vmatprep.subr.mxu0 0.0
  %2287 = vmatpush2.msra.mxu0 0.0
  %2288 = vmatprep.subr.mxu0 0.0
  %2289 = vmatpush2.msra.mxu0 0.0
  %2290 = vmatprep.subr.mxu0 0.0
  %2291 = vmatpush2.msra.mxu0 0.0
  %2292 = vmatprep.subr.mxu0 0.0
  %2293 = vmatpush2.msra.mxu0 0.0
  %2294 = vmatprep.subr.mxu0 0.0
  %2295 = vmatpush2.msra.mxu0 0.0
  %2296 = vmatprep.subr.mxu0 0.0
  %2297 = vmatpush2.msra.mxu0 0.0
  %2298 = vmatprep.subr.mxu0 0.0
  %2299 = vmatpush2.msra.mxu0 0.0
  %2300 = vmatprep.subr.mxu0 0.0
  %2301 = vmatpush2.msra.mxu0 0.0
  %2302 = vmatprep.subr.mxu0 0.0
  %2303 = vmatpush2.msra.mxu0 0.0
  %2304 = vmatprep.subr.mxu0 0.0
  %2305 = vmatpush2.msra.mxu0 0.0
  %2306 = vmatprep.subr.mxu0 0.0
  %2307 = vmatpush2.msra.mxu0 0.0
  %2308 = vmatprep.subr.mxu0 0.0
  %2309 = vmatpush2.msra.mxu0 0.0
  %2310 = vmatprep.subr.mxu0 0.0
  %2311 = vmatpush2.msra.mxu0 0.0
  %2312 = vmatprep.subr.mxu0 0.0
  %2313 = vmatpush2.msra.mxu0 0.0
  %2314 = vmatprep.mubr.f32.mxu0 0.0
  %2315 = vmatmul.mubr.f32.gmra.mxu0 %v2165
  %v2316 = vpop.f32.mrf.mxu0
  %v2317 = vadd.f32 0.0, %v2316
  %v2318 = vpop.f32.mrf.mxu0
  %v2319 = vadd.f32 0.0, %v2318
  %2320 = vdwg.mxu0
  %2321 = vmatprep.subr.mxu0 0.0
  %2322 = vmatpush1.msra.mxu0 0.0
  %2323 = vmatprep.subr.mxu0 0.0
  %2324 = vmatpush1.msra.mxu0 0.0
  %2325 = vmatprep.subr.mxu0 0.0
  %2326 = vmatpush1.msra.mxu0 0.0
  %2327 = vmatprep.subr.mxu0 0.0
  %2328 = vmatpush1.msra.mxu0 0.0
  %2329 = vmatprep.subr.mxu0 0.0
  %2330 = vmatpush1.msra.mxu0 0.0
  %2331 = vmatprep.subr.mxu0 0.0
  %2332 = vmatpush1.msra.mxu0 0.0
  %2333 = vmatprep.subr.mxu0 0.0
  %2334 = vmatpush1.msra.mxu0 0.0
  %2335 = vmatprep.subr.mxu0 0.0
  %2336 = vmatpush1.msra.mxu0 0.0
  %2337 = vmatprep.subr.mxu0 0.0
  %2338 = vmatpush1.msra.mxu0 0.0
  %2339 = vmatprep.subr.mxu0 0.0
  %2340 = vmatpush1.msra.mxu0 0.0
  %2341 = vmatprep.subr.mxu0 0.0
  %2342 = vmatpush1.msra.mxu0 0.0
  %2343 = vmatprep.subr.mxu0 0.0
  %2344 = vmatpush1.msra.mxu0 0.0
  %2345 = vmatprep.subr.mxu0 0.0
  %2346 = vmatpush1.msra.mxu0 0.0
  %2347 = vmatprep.subr.mxu0 0.0
  %2348 = vmatpush1.msra.mxu0 0.0
  %2349 = vmatprep.subr.mxu0 0.0
  %2350 = vmatpush1.msra.mxu0 0.0
  %2351 = vmatprep.subr.mxu0 %v2177
  %2352 = vmatpush1.msra.mxu0 %v2175
  %2353 = vmatprep.subr.mxu0 0.0
  %2354 = vmatpush2.msra.mxu0 0.0
  %2355 = vmatprep.subr.mxu0 0.0
  %2356 = vmatpush2.msra.mxu0 0.0
  %2357 = vmatprep.subr.mxu0 0.0
  %2358 = vmatpush2.msra.mxu0 0.0
  %2359 = vmatprep.subr.mxu0 0.0
  %2360 = vmatpush2.msra.mxu0 0.0
  %2361 = vmatprep.subr.mxu0 0.0
  %2362 = vmatpush2.msra.mxu0 0.0
  %2363 = vmatprep.subr.mxu0 0.0
  %2364 = vmatpush2.msra.mxu0 0.0
  %2365 = vmatprep.subr.mxu0 0.0
  %2366 = vmatpush2.msra.mxu0 0.0
  %2367 = vmatprep.subr.mxu0 0.0
  %2368 = vmatpush2.msra.mxu0 0.0
  %2369 = vmatprep.subr.mxu0 0.0
  %2370 = vmatpush2.msra.mxu0 0.0
  %2371 = vmatprep.subr.mxu0 0.0
  %2372 = vmatpush2.msra.mxu0 0.0
  %2373 = vmatprep.subr.mxu0 0.0
  %2374 = vmatpush2.msra.mxu0 0.0
  %2375 = vmatprep.subr.mxu0 0.0
  %2376 = vmatpush2.msra.mxu0 0.0
  %2377 = vmatprep.subr.mxu0 0.0
  %2378 = vmatpush2.msra.mxu0 0.0
  %2379 = vmatprep.subr.mxu0 0.0
  %2380 = vmatpush2.msra.mxu0 0.0
  %2381 = vmatprep.subr.mxu0 0.0
  %2382 = vmatpush2.msra.mxu0 0.0
  %2383 = vmatprep.subr.mxu0 0.0
  %2384 = vmatpush2.msra.mxu0 0.0
  %2385 = vmatprep.mubr.f32.mxu0 0.0
  %2386 = vmatmul.mubr.f32.gmra.mxu0 %v2165
  %v2387 = vpop.f32.mrf.mxu0
  %v2388 = vadd.f32 0.0, %v2387
  %v2389 = vpop.f32.mrf.mxu0
  %v2390 = vadd.f32 0.0, %v2389
  %2391 = vdwg.mxu0
  %v2392 = vadd.f32 %v2124, %v2246
  %v2393 = vadd.f32 %v2125, %v2248
  %v2394 = vadd.f32 %v2126, %v2317
  %v2395 = vadd.f32 %v2127, %v2319
  %v2396 = vadd.f32 %v2128, %v2388
  %v2397 = vadd.f32 %v2129, %v2390
  %v2398 = vld [vmem:[%s2] sm:$0xff]
  %2400 = vset.pattern.permute.xlu0 0
  %2401 = vperm.xlu0 %2400, %v2398
  %v2402 = vpop.permute.xlu0 %2401
  %v2404 = vadd.f32 %v2392, %v2402
  %v2405 = vadd.f32 %v2393, %v2402
  %v2406 = vadd.f32 %v2394, %v2402
  %v2407 = vadd.f32 %v2395, %v2402
  %v2408 = vadd.f32 %v2396, %v2402
  %v2409 = vadd.f32 %v2397, %v2402
  %v2410 = vlaneseq
  %v2411 = vand.u32 %v2410, 127
  %v2412 = vadd.s32 %v2411, 128
  %v2413 = vadd.s32 %v2411, 256
  %v2414 = vadd.s32 %v2411, 384
  %v2415 = vadd.s32 %v2411, 512
  %v2416 = vadd.s32 %v2411, 640
  %vm2417 = vcmp.lt.s32.totalorder %v2411, 0
  %v2418 = vsub.s32 0, %v2411
  %v2419 = vsel %vm2417, %v2418, %v2411
  %v2420 = vmul.u32.u64.compose %v2419, 2863311531
  %v2421 = vextract.low.u32 %v2420
  %v2422 = vextract.high.u32 %v2420
  %v2423 = vshrl.u32 %v2422, 8
  %v2424 = vmul.u32 %v2423, 384
  %v2425 = vsub.s32 %v2419, %v2424
  %v2426 = vsub.s32 0, %v2425
  %v2427 = vsel %vm2417, %v2426, %v2425
  %vm2428 = vcmp.lt.s32.totalorder %v2412, 0
  %v2429 = vsub.s32 0, %v2412
  %v2430 = vsel %vm2428, %v2429, %v2412
  %v2431 = vmul.u32.u64.compose %v2430, 2863311531
  %v2432 = vextract.low.u32 %v2431
  %v2433 = vextract.high.u32 %v2431
  %v2434 = vshrl.u32 %v2433, 8
  %v2435 = vmul.u32 %v2434, 384
  %v2436 = vsub.s32 %v2430, %v2435
  %v2437 = vsub.s32 0, %v2436
  %v2438 = vsel %vm2428, %v2437, %v2436
  %vm2439 = vcmp.lt.s32.totalorder %v2413, 0
  %v2440 = vsub.s32 0, %v2413
  %v2441 = vsel %vm2439, %v2440, %v2413
  %v2442 = vmul.u32.u64.compose %v2441, 2863311531
  %v2443 = vextract.low.u32 %v2442
  %v2444 = vextract.high.u32 %v2442
  %v2445 = vshrl.u32 %v2444, 8
  %v2446 = vmul.u32 %v2445, 384
  %v2447 = vsub.s32 %v2441, %v2446
  %v2448 = vsub.s32 0, %v2447
  %v2449 = vsel %vm2439, %v2448, %v2447
  %vm2450 = vcmp.lt.s32.totalorder %v2414, 0
  %v2451 = vsub.s32 0, %v2414
  %v2452 = vsel %vm2450, %v2451, %v2414
  %v2453 = vmul.u32.u64.compose %v2452, 2863311531
  %v2454 = vextract.low.u32 %v2453
  %v2455 = vextract.high.u32 %v2453
  %v2456 = vshrl.u32 %v2455, 8
  %v2457 = vmul.u32 %v2456, 384
  %v2458 = vsub.s32 %v2452, %v2457
  %v2459 = vsub.s32 0, %v2458
  %v2460 = vsel %vm2450, %v2459, %v2458
  %vm2461 = vcmp.lt.s32.totalorder %v2415, 0
  %v2462 = vsub.s32 0, %v2415
  %v2463 = vsel %vm2461, %v2462, %v2415
  %v2464 = vmul.u32.u64.compose %v2463, 2863311531
  %v2465 = vextract.low.u32 %v2464
  %v2466 = vextract.high.u32 %v2464
  %v2467 = vshrl.u32 %v2466, 8
  %v2468 = vmul.u32 %v2467, 384
  %v2469 = vsub.s32 %v2463, %v2468
  %v2470 = vsub.s32 0, %v2469
  %v2471 = vsel %vm2461, %v2470, %v2469
  %vm2472 = vcmp.lt.s32.totalorder %v2416, 0
  %v2473 = vsub.s32 0, %v2416
  %v2474 = vsel %vm2472, %v2473, %v2416
  %v2475 = vmul.u32.u64.compose %v2474, 2863311531
  %v2476 = vextract.low.u32 %v2475
  %v2477 = vextract.high.u32 %v2475
  %v2478 = vshrl.u32 %v2477, 8
  %v2479 = vmul.u32 %v2478, 384
  %v2480 = vsub.s32 %v2474, %v2479
  %v2481 = vsub.s32 0, %v2480
  %v2482 = vsel %vm2472, %v2481, %v2480
  %vm2483 = vcmp.ne.s32.totalorder %v2427, 0
  %vm2484 = vcmp.ne.s32.totalorder %v2438, 0
  %vm2485 = vcmp.ne.s32.totalorder %v2449, 0
  %vm2486 = vcmp.ne.s32.totalorder %v2460, 0
  %vm2487 = vcmp.ne.s32.totalorder %v2471, 0
  %vm2488 = vcmp.ne.s32.totalorder %v2482, 0
  %vm2489 = vcmp.lt.s32.totalorder %v2427, 0
  %vm2490 = vcmp.lt.s32.totalorder %v2438, 0
  %vm2491 = vcmp.lt.s32.totalorder %v2449, 0
  %vm2492 = vcmp.lt.s32.totalorder %v2460, 0
  %vm2493 = vcmp.lt.s32.totalorder %v2471, 0
  %vm2494 = vcmp.lt.s32.totalorder %v2482, 0
  %vm2495 = vmand %vm2489, %vm2483
  %vm2496 = vmand %vm2490, %vm2484
  %vm2497 = vmand %vm2491, %vm2485
  %vm2498 = vmand %vm2492, %vm2486
  %vm2499 = vmand %vm2493, %vm2487
  %vm2500 = vmand %vm2494, %vm2488
  %v2501 = vadd.s32 %v2427, 384
  %v2502 = vadd.s32 %v2438, 384
  %v2503 = vadd.s32 %v2449, 384
  %v2504 = vadd.s32 %v2460, 384
  %v2505 = vadd.s32 %v2471, 384
  %v2506 = vadd.s32 %v2482, 384
  %v2507 = vsel %vm2495, %v2501, %v2427
  %v2508 = vsel %vm2496, %v2502, %v2438
  %v2509 = vsel %vm2497, %v2503, %v2449
  %v2510 = vsel %vm2498, %v2504, %v2460
  %v2511 = vsel %vm2499, %v2505, %v2471
  %v2512 = vsel %vm2500, %v2506, %v2482
  %vm2513 = vcmp.lt.s32.totalorder %v2507, 288
  %vm2514 = vcmp.lt.s32.totalorder %v2508, 288
  %vm2515 = vcmp.lt.s32.totalorder %v2509, 288
  %vm2516 = vcmp.lt.s32.totalorder %v2510, 288
  %vm2517 = vcmp.lt.s32.totalorder %v2511, 288
  %vm2518 = vcmp.lt.s32.totalorder %v2512, 288
  %vm2519 = vcmp.lt.s32.totalorder %v2507, 0
  %v2520 = vsub.s32 0, %v2507
  %v2521 = vsel %vm2519, %v2520, %v2507
  %v2522 = vmul.u32.u64.compose %v2521, 3817748708
  %v2523 = vextract.low.u32 %v2522
  %v2524 = vextract.high.u32 %v2522
  %v2525 = vshrl.u32 %v2524, 4
  %v2526 = vmul.u32 %v2525, 18
  %v2527 = vsub.s32 %v2521, %v2526
  %v2528 = vsub.s32 0, %v2527
  %v2529 = vsel %vm2519, %v2528, %v2527
  %vm2530 = vcmp.lt.s32.totalorder %v2508, 0
  %v2531 = vsub.s32 0, %v2508
  %v2532 = vsel %vm2530, %v2531, %v2508
  %v2533 = vmul.u32.u64.compose %v2532, 3817748708
  %v2534 = vextract.low.u32 %v2533
  %v2535 = vextract.high.u32 %v2533
  %v2536 = vshrl.u32 %v2535, 4
  %v2537 = vmul.u32 %v2536, 18
  %v2538 = vsub.s32 %v2532, %v2537
  %v2539 = vsub.s32 0, %v2538
  %v2540 = vsel %vm2530, %v2539, %v2538
  %vm2541 = vcmp.lt.s32.totalorder %v2509, 0
  %v2542 = vsub.s32 0, %v2509
  %v2543 = vsel %vm2541, %v2542, %v2509
  %v2544 = vmul.u32.u64.compose %v2543, 3817748708
  %v2545 = vextract.low.u32 %v2544
  %v2546 = vextract.high.u32 %v2544
  %v2547 = vshrl.u32 %v2546, 4
  %v2548 = vmul.u32 %v2547, 18
  %v2549 = vsub.s32 %v2543, %v2548
  %v2550 = vsub.s32 0, %v2549
  %v2551 = vsel %vm2541, %v2550, %v2549
  %vm2552 = vcmp.lt.s32.totalorder %v2510, 0
  %v2553 = vsub.s32 0, %v2510
  %v2554 = vsel %vm2552, %v2553, %v2510
  %v2555 = vmul.u32.u64.compose %v2554, 3817748708
  %v2556 = vextract.low.u32 %v2555
  %v2557 = vextract.high.u32 %v2555
  %v2558 = vshrl.u32 %v2557, 4
  %v2559 = vmul.u32 %v2558, 18
  %v2560 = vsub.s32 %v2554, %v2559
  %v2561 = vsub.s32 0, %v2560
  %v2562 = vsel %vm2552, %v2561, %v2560
  %vm2563 = vcmp.lt.s32.totalorder %v2511, 0
  %v2564 = vsub.s32 0, %v2511
  %v2565 = vsel %vm2563, %v2564, %v2511
  %v2566 = vmul.u32.u64.compose %v2565, 3817748708
  %v2567 = vextract.low.u32 %v2566
  %v2568 = vextract.high.u32 %v2566
  %v2569 = vshrl.u32 %v2568, 4
  %v2570 = vmul.u32 %v2569, 18
  %v2571 = vsub.s32 %v2565, %v2570
  %v2572 = vsub.s32 0, %v2571
  %v2573 = vsel %vm2563, %v2572, %v2571
  %vm2574 = vcmp.lt.s32.totalorder %v2512, 0
  %v2575 = vsub.s32 0, %v2512
  %v2576 = vsel %vm2574, %v2575, %v2512
  %v2577 = vmul.u32.u64.compose %v2576, 3817748708
  %v2578 = vextract.low.u32 %v2577
  %v2579 = vextract.high.u32 %v2577
  %v2580 = vshrl.u32 %v2579, 4
  %v2581 = vmul.u32 %v2580, 18
  %v2582 = vsub.s32 %v2576, %v2581
  %v2583 = vsub.s32 0, %v2582
  %v2584 = vsel %vm2574, %v2583, %v2582
  %vm2585 = vcmp.ne.s32.totalorder %v2529, 0
  %vm2586 = vcmp.ne.s32.totalorder %v2540, 0
  %vm2587 = vcmp.ne.s32.totalorder %v2551, 0
  %vm2588 = vcmp.ne.s32.totalorder %v2562, 0
  %vm2589 = vcmp.ne.s32.totalorder %v2573, 0
  %vm2590 = vcmp.ne.s32.totalorder %v2584, 0
  %vm2591 = vcmp.lt.s32.totalorder %v2529, 0
  %vm2592 = vcmp.lt.s32.totalorder %v2540, 0
  %vm2593 = vcmp.lt.s32.totalorder %v2551, 0
  %vm2594 = vcmp.lt.s32.totalorder %v2562, 0
  %vm2595 = vcmp.lt.s32.totalorder %v2573, 0
  %vm2596 = vcmp.lt.s32.totalorder %v2584, 0
  %vm2597 = vmand %vm2591, %vm2585
  %vm2598 = vmand %vm2592, %vm2586
  %vm2599 = vmand %vm2593, %vm2587
  %vm2600 = vmand %vm2594, %vm2588
  %vm2601 = vmand %vm2595, %vm2589
  %vm2602 = vmand %vm2596, %vm2590
  %v2603 = vadd.s32 %v2529, 18
  %v2604 = vadd.s32 %v2540, 18
  %v2605 = vadd.s32 %v2551, 18
  %v2606 = vadd.s32 %v2562, 18
  %v2607 = vadd.s32 %v2573, 18
  %v2608 = vadd.s32 %v2584, 18
  %v2609 = vsel %vm2597, %v2603, %v2529
  %v2610 = vsel %vm2598, %v2604, %v2540
  %v2611 = vsel %vm2599, %v2605, %v2551
  %v2612 = vsel %vm2600, %v2606, %v2562
  %v2613 = vsel %vm2601, %v2607, %v2573
  %v2614 = vsel %vm2602, %v2608, %v2584
  %vm2615 = vcmp.lt.s32.totalorder %v2609, 16
  %vm2616 = vcmp.lt.s32.totalorder %v2610, 16
  %vm2617 = vcmp.lt.s32.totalorder %v2611, 16
  %vm2618 = vcmp.lt.s32.totalorder %v2612, 16
  %vm2619 = vcmp.lt.s32.totalorder %v2613, 16
  %vm2620 = vcmp.lt.s32.totalorder %v2614, 16
  %vm2621 = vmand %vm2513, %vm2615
  %vm2622 = vmand %vm2514, %vm2616
  %vm2623 = vmand %vm2515, %vm2617
  %vm2624 = vmand %vm2516, %vm2618
  %vm2625 = vmand %vm2517, %vm2619
  %vm2626 = vmand %vm2518, %vm2620
  %v2627 = vsel %vm2621, 1, 0
  %v2628 = vsel %vm2622, 1, 0
  %v2629 = vsel %vm2623, 1, 0
  %v2630 = vsel %vm2624, 1, 0
  %v2631 = vsel %vm2625, 1, 0
  %v2632 = vsel %vm2626, 1, 0
  %v2633 = vcvt.s32.f32 %v2627
  %v2634 = vcvt.s32.f32 %v2628
  %v2635 = vcvt.s32.f32 %v2629
  %v2636 = vcvt.s32.f32 %v2630
  %v2637 = vcvt.s32.f32 %v2631
  %v2638 = vcvt.s32.f32 %v2632
  %v2639 = vmul.f32 %v2404, %v2633
  %v2640 = vmul.f32 %v2405, %v2634
  %v2641 = vmul.f32 %v2406, %v2635
  %v2642 = vmul.f32 %v2407, %v2636
  %v2643 = vmul.f32 %v2408, %v2637
  %v2644 = vmul.f32 %v2409, %v2638
  %v2645 = vadd.f32 %v2639, %v2640
  %v2646 = vadd.f32 %v2645, %v2641
  %v2647 = vadd.f32 %v2646, %v2642
  %v2648 = vadd.f32 %v2647, %v2643
  %v2649 = vadd.f32 %v2648, %v2644
  %2650 = vadd.xlane.f32.xlu0 %v2649
  %v2651 = vpop.xlane.xlu0 %2650
  %v2652 = vmul.f32 %v2639, %v2404
  %v2653 = vmul.f32 %v2640, %v2405
  %v2654 = vmul.f32 %v2641, %v2406
  %v2655 = vmul.f32 %v2642, %v2407
  %v2656 = vmul.f32 %v2643, %v2408
  %v2657 = vmul.f32 %v2644, %v2409
  %v2658 = vadd.f32 %v2652, %v2653
  %v2659 = vadd.f32 %v2658, %v2654
  %v2660 = vadd.f32 %v2659, %v2655
  %v2661 = vadd.f32 %v2660, %v2656
  %v2662 = vadd.f32 %v2661, %v2657
  %2663 = vadd.xlane.f32.xlu0 %v2662
  %v2664 = vpop.xlane.xlu0 %2663
  %v2665 = vmul.f32 %v2651, 0.001953125
  %v2666 = vmul.f32 %v2664, 0.001953125
  %v2667 = vmul.f32 %v2665, %v2665
  %v2668 = vsub.f32 %v2666, %v2667
  %v2669 = vadd.f32 %v2668, 1e-05
  %v2670 = vrsqrt.pop %v2669
  %v2671 = vld [vmem:[%s3] sm:$0xff]
  %v2672 = vmul.f32 %v2671, %v2670
  %v2673 = vld [vmem:[%s4] sm:$0xff]
  %v2674 = vmul.f32 %v2665, %v2672
  %v2675 = vsub.f32 %v2673, %v2674
  %2677 = vset.pattern.permute.xlu0 0
  %2678 = vperm.xlu0 %2677, %v2672
  %v2679 = vpop.permute.xlu0 %2678
  %v2681 = vmul.f32 %v2404, %v2679
  %v2682 = vmul.f32 %v2405, %v2679
  %v2683 = vmul.f32 %v2406, %v2679
  %v2684 = vmul.f32 %v2407, %v2679
  %v2685 = vmul.f32 %v2408, %v2679
  %v2686 = vmul.f32 %v2409, %v2679
  %2688 = vset.pattern.permute.xlu0 0
  %2689 = vperm.xlu0 %2688, %v2675
  %v2690 = vpop.permute.xlu0 %2689
  %v2692 = vadd.f32 %v2681, %v2690
  %v2693 = vadd.f32 %v2682, %v2690
  %v2694 = vadd.f32 %v2683, %v2690
  %v2695 = vadd.f32 %v2684, %v2690
  %v2696 = vadd.f32 %v2685, %v2690
  %v2697 = vadd.f32 %v2686, %v2690
  %v2698 = vmax.f32 %v2692, 0.0
  %v2699 = vmax.f32 %v2693, 0.0
  %v2700 = vmax.f32 %v2694, 0.0
  %v2701 = vmax.f32 %v2695, 0.0
  %v2702 = vmax.f32 %v2696, 0.0
  %v2703 = vmax.f32 %v2697, 0.0
  %2704 = vst [vmem:[%s5] sm:$0xff] %v2698
  %2705 = vst [vmem:[%s5 + $0x8] sm:$0xff] %v2699
  %2706 = vst [vmem:[%s5 + $0x10] sm:$0xff] %v2700
  %s2707 = scalar_lea.vmem %s5, 24
  %2708 = vst [vmem:[%s2707] sm:$0xff] %v2701
  %2709 = vst [vmem:[%s2707 + $0x8] sm:$0xff] %v2702
  %2710 = vst [vmem:[%s2707 + $0x10] sm:$0xff] %v2703
  // Predicated region
  $region22: #{single_conv_forward.1} parent=0 // pred_check
    _
  $region23: #{single_conv_forward.1} parent=0 // pred_check_branch
    %2712 = sbr.rel (0) target = $region25
  $region24: #{single_conv_forward.1} parent=0 // pred_region
    _
  $region25: #{single_conv_forward.1} parent=0 // pred_fallthru
    _
  // Predicated region
  $region26: #{single_conv_forward.1} parent=0 // pred_check
    _
  $region27: #{single_conv_forward.1} parent=0 // pred_check_branch
    %2714 = sbr.rel (0) target = $region29
  $region28: #{single_conv_forward.1} parent=0 // pred_region
    _
  $region29: #{single_conv_forward.1} parent=0 // pred_fallthru
    _

</llo_original>
